<compile_context>
chip_gen: v6e
topology: v6e:2x2x1
jax: 0.10.0
libtpu: 0.0.40
codegen_flags: <defaults>
</compile_context>

<pallas_src>
import functools
import math

import jax
import jax.numpy as jnp
from jax import lax
from jax.experimental import pallas as pl
from jax.experimental.pallas import tpu as pltpu

_EPS = 1e-6
_NEG_INF = -1e30


def _se3_stack_kernel(*refs, norm_flags):
    """Fused stack of GSE3Res (+ optional GNormBias) layers for ONE graph.

    refs = (pos_ref (N,3), posT_ref (3,N), v_ref (N,3*Cin),
            [wq, wk, wkd, wv_blk, wsiv_blk, wsis_blk, bnorm] * n_layers,
            out_ref (N, 3*Cout_final))

    Fully connected graph, no self edges:
      * type-0 node features  = per-channel vector norms
      * edge key              = W_k inv_src + dist_ij * w_kd   (radial part)
      * attention             = softmax_j(q_i . k_ij / sqrt(dk))
      * value                 = W_v (v_src with rel_ij added to channel 0)   (x_ij='add')
      * skip='cat' -> 1x1 self-interaction -> norm-gated nonlinearity (GNormBias)
    """
    n_layers = len(norm_flags)
    pos_ref, posT_ref, v_ref = refs[0], refs[1], refs[2]
    w_refs = refs[3:3 + 7 * n_layers]
    out_ref = refs[3 + 7 * n_layers]

    pos = pos_ref[...]                       # (N, 3)
    posT = posT_ref[...]                     # (3, N)
    N = pos.shape[0]

    # ---- pairwise geometry & self-edge mask: computed ONCE for all layers --
    relx = posT[0:1, :] - pos[:, 0:1]        # rel[i, j] = pos[j] - pos[i]
    rely = posT[1:2, :] - pos[:, 1:2]
    relz = posT[2:3, :] - pos[:, 2:3]
    r2 = relx * relx + rely * rely + relz * relz
    dist = jnp.sqrt(r2)                      # diag is exactly 0 and is masked below

    ii = lax.broadcasted_iota(jnp.int32, (N, N), 0)
    jj = lax.broadcasted_iota(jnp.int32, (N, N), 1)
    diag = ii == jj

    # degree-1 features, lane-stacked per component: columns [x | y | z]
    h = v_ref[...]                           # (N, 3*Cin) f32

    for li in range(n_layers):
        wq_r, wk_r, wkd_r, wv_r, wsiv_r, wsis_r, bnorm_r = w_refs[7 * li:7 * li + 7]
        apply_norm = norm_flags[li]
        cin3 = h.shape[1]
        cin = cin3 // 3
        hx = h[:, 0:cin]
        hy = h[:, cin:2 * cin]
        hz = h[:, 2 * cin:3 * cin]

        # ---- invariant (type-0) node features: per-channel vector norms ----
        inv = jnp.sqrt(hx * hx + hy * hy + hz * hz + _EPS)          # (N, Cin) f32
        inv_b = inv.astype(jnp.bfloat16)

        # ---- attention logits (bf16 MXU operands, f32 accumulate) ----------
        q = jnp.dot(inv_b, wq_r[...], preferred_element_type=jnp.float32)      # (N, Ck)
        k = jnp.dot(inv_b, wk_r[...], preferred_element_type=jnp.float32)      # (N, Ck)
        ck = q.shape[1]
        q_b = q.astype(jnp.bfloat16)
        k_b = k.astype(jnp.bfloat16)
        logits = lax.dot_general(q_b, k_b, (((1,), (1,)), ((), ())),
                                 preferred_element_type=jnp.float32)           # (N, N)
        qd = jnp.dot(q_b, wkd_r[...], preferred_element_type=jnp.float32)      # (N, 1)
        logits = (logits + dist * qd) * (1.0 / math.sqrt(float(ck)))
        logits = jnp.where(diag, jnp.float32(_NEG_INF), logits)    # no self edges

        # ---- softmax over source nodes j (all f32) --------------------------
        mmax = jnp.max(logits, axis=1, keepdims=True)
        e = jnp.exp(logits - mmax)
        alpha = e * pl.reciprocal(jnp.sum(e, axis=1, keepdims=True), approx=True)

        # ---- equivariant message passing: all 3 components in one dot ------
        alpha_b = alpha.astype(jnp.bfloat16)
        agg = jnp.dot(alpha_b, h.astype(jnp.bfloat16),
                      preferred_element_type=jnp.float32)           # (N, 3*Cin)

        # x_ij='add': attention-weighted relative position -> channel 0 of each component
        arx = jnp.sum(alpha * relx, axis=1, keepdims=True)          # (N, 1)
        ary = jnp.sum(alpha * rely, axis=1, keepdims=True)
        arz = jnp.sum(alpha * relz, axis=1, keepdims=True)
        chan = lax.broadcasted_iota(jnp.int32, (N, cin3), 1)
        rel_add = (jnp.where(chan == 0, arx, 0.0)
                   + jnp.where(chan == cin, ary, 0.0)
                   + jnp.where(chan == 2 * cin, arz, 0.0))
        m = agg + rel_add                                            # (N, 3*Cin)

        # value projection + concat-free skip='cat' 1x1 self-interaction
        vv = jnp.dot(m.astype(jnp.bfloat16), wv_r[...],
                     preferred_element_type=jnp.float32)             # (N, 3*Cv)
        out = (jnp.dot(vv.astype(jnp.bfloat16), wsiv_r[...],
                       preferred_element_type=jnp.float32)
               + jnp.dot(h.astype(jnp.bfloat16), wsis_r[...],
                         preferred_element_type=jnp.float32))        # (N, 3*Cout)

        if apply_norm:
            # GNormBias: f <- f * relu(||f|| + b) / ||f||   (equivariant gate)
            cout = out.shape[1] // 3
            ox = out[:, 0:cout]
            oy = out[:, cout:2 * cout]
            oz = out[:, 2 * cout:3 * cout]
            n = jnp.sqrt(ox * ox + oy * oy + oz * oz + _EPS)         # (N, Cout)
            scale = (jnp.maximum(n + bnorm_r[...], 0.0)
                     * pl.reciprocal(n, approx=True))
            scale3 = jnp.concatenate([scale, scale, scale], axis=1)  # (N, 3*Cout)
            out = out * scale3

        h = out

    out_ref[...] = h                                                 # single store


def init_se3_params(key, input_vector_multiplicity, num_layers, num_channels,
                    div=4.0, n_heads=1):
    """Deterministic parameter init mirroring the module's layer stack."""
    del n_heads  # single-head path implemented
    layers = []
    cin = input_vector_multiplicity
    c_att = max(1, int(num_channels // div))
    # hidden GSE3Res + GNormBias blocks
    for _ in range(num_layers):
        layers.append(dict(cin=cin, ck=c_att, cv=c_att, cout=num_channels,
                           apply_norm=True))
        cin = num_channels
    # final GSE3Res -> fiber {1: 2}, div=1
    layers.append(dict(cin=cin, ck=2, cv=2, cout=2, apply_norm=False))

    params, norms = [], []
    for cfg in layers:
        key, *ks = jax.random.split(key, 7)
        ci, ck, cv, co = cfg["cin"], cfg["ck"], cfg["cv"], cfg["cout"]
        params.append({
            "wq":    jax.random.normal(ks[0], (ci, ck), jnp.float32) / jnp.sqrt(ci),
            "wk":    jax.random.normal(ks[1], (ci, ck), jnp.float32) / jnp.sqrt(ci),
            "wkd":   jax.random.normal(ks[2], (ck, 1), jnp.float32) / jnp.sqrt(ck),
            "wv":    jax.random.normal(ks[3], (ci, cv), jnp.float32) / jnp.sqrt(ci),
            "wsi":   jax.random.normal(ks[4], (cv + ci, co), jnp.float32) / jnp.sqrt(cv + ci),
            "bnorm": 0.1 * jax.random.normal(ks[5], (1, co), jnp.float32),
        })
        norms.append(cfg["apply_norm"])
    return params, norms


def _pack_layer_weights(params):
    """Host-side prep: split wsi (concat-free skip), expand per-degree weights
    to block-diagonal kron(I3, W) so the 3 vector components share one matmul,
    and pre-cast MXU operands to bf16."""
    eye3 = jnp.eye(3, dtype=jnp.float32)
    flat = []
    for p in params:
        cv = p["wv"].shape[1]
        wsi_v = p["wsi"][:cv, :]
        wsi_s = p["wsi"][cv:, :]
        flat += [
            p["wq"].astype(jnp.bfloat16),
            p["wk"].astype(jnp.bfloat16),
            p["wkd"].astype(jnp.bfloat16),
            jnp.kron(eye3, p["wv"]).astype(jnp.bfloat16),
            jnp.kron(eye3, wsi_v).astype(jnp.bfloat16),
            jnp.kron(eye3, wsi_s).astype(jnp.bfloat16),
            p["bnorm"],                                   # stays f32
        ]
    return flat


def se3_transformer_forward(pos, v, params, norms):
    """pos: (B, N, 3) node coordinates; v: (B, N, Cin, 3) degree-1 node features
    (PyTorch G.ndata['v'] convention).  Returns (B, N, 2, 3).
    2-D / 3-D inputs (single graph) are also accepted."""
    if pos.ndim == 2:
        return se3_transformer_forward(pos[None], v[None], params, norms)[0]

    B, N, _ = pos.shape
    cin = v.shape[2]
    cout_f = params[-1]["wsi"].shape[1]

    posT = jnp.transpose(pos, (0, 2, 1))                         # (B, 3, N)
    vcat = jnp.transpose(v, (0, 1, 3, 2)).reshape(B, N, 3 * cin)  # (B, N, 3*Cin)
    flat_w = _pack_layer_weights(params)

    kernel = functools.partial(_se3_stack_kernel, norm_flags=tuple(norms))

    graph_specs = [
        pl.BlockSpec((None, N, 3), lambda b: (b, 0, 0)),
        pl.BlockSpec((None, 3, N), lambda b: (b, 0, 0)),
        pl.BlockSpec((None, N, 3 * cin), lambda b: (b, 0, 0)),
    ]
    weight_specs = [pl.BlockSpec(w.shape, lambda b: (0, 0)) for w in flat_w]

    out = pl.pallas_call(
        kernel,
        out_shape=jax.ShapeDtypeStruct((B, N, 3 * cout_f), jnp.float32),
        grid=(B,),
        in_specs=graph_specs + weight_specs,
        out_specs=pl.BlockSpec((None, N, 3 * cout_f), lambda b: (b, 0, 0)),
        compiler_params=pltpu.CompilerParams(
            dimension_semantics=("parallel",)),   # batch of graphs -> both TCs on v7x
    )(pos, posT, vcat, *flat_w)

    # (B, N, 3*Cout) -> (B, N, Cout, 3)  (PyTorch h_enc['1'] convention)
    return jnp.transpose(out.reshape(B, N, 3, cout_f), (0, 1, 3, 2))


if __name__ == "__main__":
    key = jax.random.PRNGKey(0)
    k_pos, k_v, k_param = jax.random.split(key, 3)

    # small, module-consistent shapes
    B = 2                              # batch of graphs (parallel grid axis)
    N = 8                              # nodes in the (fully connected) graph
    input_vector_multiplicity = 4      # G.ndata['v'] channels
    num_layers = 2
    num_channels = 8
    div = 4.0

    pos = jax.random.normal(k_pos, (B, N, 3), jnp.float32)
    v = jax.random.normal(k_v, (B, N, input_vector_multiplicity, 3), jnp.float32)

    params, norms = init_se3_params(k_param, input_vector_multiplicity,
                                    num_layers, num_channels, div=div)

    out = se3_transformer_forward(pos, v, params, norms)
    out = jax.block_until_ready(out)
    assert out.shape == (B, N, 2, 3), out.shape
    assert jnp.all(jnp.isfinite(out))
    print("KERNEL_OK")
</pallas_src>

<mosaic_0001>
module attributes {stable_mosaic.version = 11 : i64} {
  func.func @_se3_stack_kernel(%arg0: i32, %arg1: memref<1x8x3xf32, #tpu.memory_space<vmem>>, %arg2: memref<1x3x8xf32, #tpu.memory_space<vmem>>, %arg3: memref<1x8x12xf32, #tpu.memory_space<vmem>>, %arg4: memref<4x2xbf16, #tpu.memory_space<vmem>>, %arg5: memref<4x2xbf16, #tpu.memory_space<vmem>>, %arg6: memref<2x1xbf16, #tpu.memory_space<vmem>>, %arg7: memref<12x6xbf16, #tpu.memory_space<vmem>>, %arg8: memref<6x24xbf16, #tpu.memory_space<vmem>>, %arg9: memref<12x24xbf16, #tpu.memory_space<vmem>>, %arg10: memref<1x8xf32, #tpu.memory_space<vmem>>, %arg11: memref<8x2xbf16, #tpu.memory_space<vmem>>, %arg12: memref<8x2xbf16, #tpu.memory_space<vmem>>, %arg13: memref<2x1xbf16, #tpu.memory_space<vmem>>, %arg14: memref<24x6xbf16, #tpu.memory_space<vmem>>, %arg15: memref<6x24xbf16, #tpu.memory_space<vmem>>, %arg16: memref<24x24xbf16, #tpu.memory_space<vmem>>, %arg17: memref<1x8xf32, #tpu.memory_space<vmem>>, %arg18: memref<8x2xbf16, #tpu.memory_space<vmem>>, %arg19: memref<8x2xbf16, #tpu.memory_space<vmem>>, %arg20: memref<2x1xbf16, #tpu.memory_space<vmem>>, %arg21: memref<24x6xbf16, #tpu.memory_space<vmem>>, %arg22: memref<6x6xbf16, #tpu.memory_space<vmem>>, %arg23: memref<24x6xbf16, #tpu.memory_space<vmem>>, %arg24: memref<1x2xf32, #tpu.memory_space<vmem>>, %arg25: memref<1x8x6xf32, #tpu.memory_space<vmem>>) attributes {dimension_semantics = [#tpu.dimension_semantics<parallel>], iteration_bounds = array<i64: 2>, scalar_prefetch = 0 : i64, scratch_operands = 0 : i64, tpu.core_type = #tpu.core_type<tc>, window_params = [{transform_indices = @transform_0, window_bounds = array<i64: 1, 8, 3>}, {transform_indices = @transform_1, window_bounds = array<i64: 1, 3, 8>}, {transform_indices = @transform_2, window_bounds = array<i64: 1, 8, 12>}, {pipeline_mode = #tpu.pipeline_mode<synchronous>, transform_indices = @transform_3, window_bounds = array<i64: 4, 2>}, {pipeline_mode = #tpu.pipeline_mode<synchronous>, transform_indices = @transform_4, window_bounds = array<i64: 4, 2>}, {pipeline_mode = #tpu.pipeline_mode<synchronous>, transform_indices = @transform_5, window_bounds = array<i64: 2, 1>}, {pipeline_mode = #tpu.pipeline_mode<synchronous>, transform_indices = @transform_6, window_bounds = array<i64: 12, 6>}, {pipeline_mode = #tpu.pipeline_mode<synchronous>, transform_indices = @transform_7, window_bounds = array<i64: 6, 24>}, {pipeline_mode = #tpu.pipeline_mode<synchronous>, transform_indices = @transform_8, window_bounds = array<i64: 12, 24>}, {pipeline_mode = #tpu.pipeline_mode<synchronous>, transform_indices = @transform_9, window_bounds = array<i64: 1, 8>}, {pipeline_mode = #tpu.pipeline_mode<synchronous>, transform_indices = @transform_10, window_bounds = array<i64: 8, 2>}, {pipeline_mode = #tpu.pipeline_mode<synchronous>, transform_indices = @transform_11, window_bounds = array<i64: 8, 2>}, {pipeline_mode = #tpu.pipeline_mode<synchronous>, transform_indices = @transform_12, window_bounds = array<i64: 2, 1>}, {pipeline_mode = #tpu.pipeline_mode<synchronous>, transform_indices = @transform_13, window_bounds = array<i64: 24, 6>}, {pipeline_mode = #tpu.pipeline_mode<synchronous>, transform_indices = @transform_14, window_bounds = array<i64: 6, 24>}, {pipeline_mode = #tpu.pipeline_mode<synchronous>, transform_indices = @transform_15, window_bounds = array<i64: 24, 24>}, {pipeline_mode = #tpu.pipeline_mode<synchronous>, transform_indices = @transform_16, window_bounds = array<i64: 1, 8>}, {pipeline_mode = #tpu.pipeline_mode<synchronous>, transform_indices = @transform_17, window_bounds = array<i64: 8, 2>}, {pipeline_mode = #tpu.pipeline_mode<synchronous>, transform_indices = @transform_18, window_bounds = array<i64: 8, 2>}, {pipeline_mode = #tpu.pipeline_mode<synchronous>, transform_indices = @transform_19, window_bounds = array<i64: 2, 1>}, {pipeline_mode = #tpu.pipeline_mode<synchronous>, transform_indices = @transform_20, window_bounds = array<i64: 24, 6>}, {pipeline_mode = #tpu.pipeline_mode<synchronous>, transform_indices = @transform_21, window_bounds = array<i64: 6, 6>}, {pipeline_mode = #tpu.pipeline_mode<synchronous>, transform_indices = @transform_22, window_bounds = array<i64: 24, 6>}, {pipeline_mode = #tpu.pipeline_mode<synchronous>, transform_indices = @transform_23, window_bounds = array<i64: 1, 2>}, {transform_indices = @transform_24, window_bounds = array<i64: 1, 8, 6>}]} {
    %c0 = arith.constant 0 : index
    %c0_0 = arith.constant 0 : index
    %c0_1 = arith.constant 0 : index
    %0 = vector.load %arg1[%c0, %c0_0, %c0_1] : memref<1x8x3xf32, #tpu.memory_space<vmem>>, vector<1x8x3xf32>
    %1 = vector.shape_cast %0 : vector<1x8x3xf32> to vector<8x3xf32>
    %c0_2 = arith.constant 0 : index
    %c0_3 = arith.constant 0 : index
    %c0_4 = arith.constant 0 : index
    %2 = vector.load %arg2[%c0_2, %c0_3, %c0_4] : memref<1x3x8xf32, #tpu.memory_space<vmem>>, vector<1x3x8xf32>
    %3 = vector.shape_cast %2 : vector<1x3x8xf32> to vector<3x8xf32>
    %4 = vector.extract_strided_slice %3 {offsets = [0, 0], sizes = [1, 8], strides = [1, 1]} : vector<3x8xf32> to vector<1x8xf32>
    %5 = vector.extract_strided_slice %1 {offsets = [0, 0], sizes = [8, 1], strides = [1, 1]} : vector<8x3xf32> to vector<8x1xf32>
    %6 = vector.broadcast %4 : vector<1x8xf32> to vector<8x8xf32>
    %7 = vector.broadcast %5 : vector<8x1xf32> to vector<8x8xf32>
    %8 = arith.subf %6, %7 : vector<8x8xf32>
    %9 = vector.extract_strided_slice %3 {offsets = [1, 0], sizes = [1, 8], strides = [1, 1]} : vector<3x8xf32> to vector<1x8xf32>
    %10 = vector.extract_strided_slice %1 {offsets = [0, 1], sizes = [8, 1], strides = [1, 1]} : vector<8x3xf32> to vector<8x1xf32>
    %11 = vector.broadcast %9 : vector<1x8xf32> to vector<8x8xf32>
    %12 = vector.broadcast %10 : vector<8x1xf32> to vector<8x8xf32>
    %13 = arith.subf %11, %12 : vector<8x8xf32>
    %14 = vector.extract_strided_slice %3 {offsets = [2, 0], sizes = [1, 8], strides = [1, 1]} : vector<3x8xf32> to vector<1x8xf32>
    %15 = vector.extract_strided_slice %1 {offsets = [0, 2], sizes = [8, 1], strides = [1, 1]} : vector<8x3xf32> to vector<8x1xf32>
    %16 = vector.broadcast %14 : vector<1x8xf32> to vector<8x8xf32>
    %17 = vector.broadcast %15 : vector<8x1xf32> to vector<8x8xf32>
    %18 = arith.subf %16, %17 : vector<8x8xf32>
    %19 = arith.mulf %8, %8 : vector<8x8xf32>
    %20 = arith.mulf %13, %13 : vector<8x8xf32>
    %21 = arith.addf %19, %20 : vector<8x8xf32>
    %22 = arith.mulf %18, %18 : vector<8x8xf32>
    %23 = arith.addf %21, %22 : vector<8x8xf32>
    %24 = math.sqrt %23 : vector<8x8xf32>
    %25 = tpu.iota {dimensions = array<i32: 0>} : vector<8x8xi32>
    %26 = tpu.iota {dimensions = array<i32: 1>} : vector<8x8xi32>
    %27 = arith.cmpi eq, %25, %26 : vector<8x8xi32>
    %c0_5 = arith.constant 0 : index
    %c0_6 = arith.constant 0 : index
    %c0_7 = arith.constant 0 : index
    %28 = vector.load %arg3[%c0_5, %c0_6, %c0_7] : memref<1x8x12xf32, #tpu.memory_space<vmem>>, vector<1x8x12xf32>
    %29 = vector.shape_cast %28 : vector<1x8x12xf32> to vector<8x12xf32>
    %30 = vector.extract_strided_slice %29 {offsets = [0, 0], sizes = [8, 4], strides = [1, 1]} : vector<8x12xf32> to vector<8x4xf32>
    %31 = vector.extract_strided_slice %29 {offsets = [0, 4], sizes = [8, 4], strides = [1, 1]} : vector<8x12xf32> to vector<8x4xf32>
    %32 = vector.extract_strided_slice %29 {offsets = [0, 8], sizes = [8, 4], strides = [1, 1]} : vector<8x12xf32> to vector<8x4xf32>
    %33 = arith.mulf %30, %30 : vector<8x4xf32>
    %34 = arith.mulf %31, %31 : vector<8x4xf32>
    %35 = arith.addf %33, %34 : vector<8x4xf32>
    %36 = arith.mulf %32, %32 : vector<8x4xf32>
    %37 = arith.addf %35, %36 : vector<8x4xf32>
    %cst = arith.constant 9.99999997E-7 : f32
    %38 = vector.broadcast %cst : f32 to vector<8x4xf32>
    %39 = arith.addf %37, %38 : vector<8x4xf32>
    %40 = math.sqrt %39 : vector<8x4xf32>
    %41 = arith.truncf %40 : vector<8x4xf32> to vector<8x4xbf16>
    %c0_8 = arith.constant 0 : index
    %c0_9 = arith.constant 0 : index
    %42 = vector.load %arg4[%c0_8, %c0_9] : memref<4x2xbf16, #tpu.memory_space<vmem>>, vector<4x2xbf16>
    %cst_10 = arith.constant dense<0.000000e+00> : vector<8x2xf32>
    %43 = tpu.matmul %41, %42, %cst_10 {dimension_numbers = #tpu.dot_dimension_numbers<[1], [0], [0], [1], [0, 0, 1, 1], [], []>} : vector<8x4xbf16>, vector<4x2xbf16>, vector<8x2xf32> -> vector<8x2xf32>
    %c0_11 = arith.constant 0 : index
    %c0_12 = arith.constant 0 : index
    %44 = vector.load %arg5[%c0_11, %c0_12] : memref<4x2xbf16, #tpu.memory_space<vmem>>, vector<4x2xbf16>
    %cst_13 = arith.constant dense<0.000000e+00> : vector<8x2xf32>
    %45 = tpu.matmul %41, %44, %cst_13 {dimension_numbers = #tpu.dot_dimension_numbers<[1], [0], [0], [1], [0, 0, 1, 1], [], []>} : vector<8x4xbf16>, vector<4x2xbf16>, vector<8x2xf32> -> vector<8x2xf32>
    %46 = arith.truncf %43 : vector<8x2xf32> to vector<8x2xbf16>
    %47 = arith.truncf %45 : vector<8x2xf32> to vector<8x2xbf16>
    %cst_14 = arith.constant dense<0.000000e+00> : vector<8x8xf32>
    %48 = tpu.matmul %46, %47, %cst_14 {dimension_numbers = #tpu.dot_dimension_numbers<[1], [1], [0], [0], [0, 0, 1, 0], [], []>} : vector<8x2xbf16>, vector<8x2xbf16>, vector<8x8xf32> -> vector<8x8xf32>
    %c0_15 = arith.constant 0 : index
    %c0_16 = arith.constant 0 : index
    %49 = vector.load %arg6[%c0_15, %c0_16] : memref<2x1xbf16, #tpu.memory_space<vmem>>, vector<2x1xbf16>
    %cst_17 = arith.constant dense<0.000000e+00> : vector<8x1xf32>
    %50 = tpu.matmul %46, %49, %cst_17 {dimension_numbers = #tpu.dot_dimension_numbers<[1], [0], [0], [1], [0, 0, 1, 1], [], []>} : vector<8x2xbf16>, vector<2x1xbf16>, vector<8x1xf32> -> vector<8x1xf32>
    %51 = vector.broadcast %50 : vector<8x1xf32> to vector<8x8xf32>
    %52 = arith.mulf %24, %51 : vector<8x8xf32>
    %53 = arith.addf %48, %52 : vector<8x8xf32>
    %cst_18 = arith.constant 0.707106769 : f32
    %54 = vector.broadcast %cst_18 : f32 to vector<8x8xf32>
    %55 = arith.mulf %53, %54 : vector<8x8xf32>
    %cst_19 = arith.constant -1.000000e+30 : f32
    %56 = vector.broadcast %cst_19 : f32 to vector<8x8xf32>
    %57 = arith.select %27, %56, %55 : vector<8x8xi1>, vector<8x8xf32>
    %cst_20 = arith.constant dense<0xFF800000> : vector<8xf32>
    %58 = vector.multi_reduction <maximumf>, %57, %cst_20 [1] : vector<8x8xf32> to vector<8xf32>
    %59 = vector.shape_cast %58 : vector<8xf32> to vector<8x1xf32>
    %60 = vector.broadcast %59 : vector<8x1xf32> to vector<8x8xf32>
    %61 = arith.subf %57, %60 : vector<8x8xf32>
    %62 = math.exp %61 : vector<8x8xf32>
    %cst_21 = arith.constant dense<0.000000e+00> : vector<8xf32>
    %63 = vector.multi_reduction <add>, %62, %cst_21 [1] : vector<8x8xf32> to vector<8xf32>
    %64 = vector.shape_cast %63 : vector<8xf32> to vector<8x1xf32>
    %65 = tpu.reciprocal %64 {approx = true} : vector<8x1xf32> -> vector<8x1xf32>
    %66 = vector.broadcast %65 : vector<8x1xf32> to vector<8x8xf32>
    %67 = arith.mulf %62, %66 : vector<8x8xf32>
    %68 = arith.truncf %67 : vector<8x8xf32> to vector<8x8xbf16>
    %69 = arith.truncf %29 : vector<8x12xf32> to vector<8x12xbf16>
    %cst_22 = arith.constant dense<0.000000e+00> : vector<8x12xf32>
    %70 = tpu.matmul %68, %69, %cst_22 {dimension_numbers = #tpu.dot_dimension_numbers<[1], [0], [0], [1], [0, 0, 1, 1], [], []>} : vector<8x8xbf16>, vector<8x12xbf16>, vector<8x12xf32> -> vector<8x12xf32>
    %71 = arith.mulf %67, %8 : vector<8x8xf32>
    %cst_23 = arith.constant dense<0.000000e+00> : vector<8xf32>
    %72 = vector.multi_reduction <add>, %71, %cst_23 [1] : vector<8x8xf32> to vector<8xf32>
    %73 = vector.shape_cast %72 : vector<8xf32> to vector<8x1xf32>
    %74 = arith.mulf %67, %13 : vector<8x8xf32>
    %cst_24 = arith.constant dense<0.000000e+00> : vector<8xf32>
    %75 = vector.multi_reduction <add>, %74, %cst_24 [1] : vector<8x8xf32> to vector<8xf32>
    %76 = vector.shape_cast %75 : vector<8xf32> to vector<8x1xf32>
    %77 = arith.mulf %67, %18 : vector<8x8xf32>
    %cst_25 = arith.constant dense<0.000000e+00> : vector<8xf32>
    %78 = vector.multi_reduction <add>, %77, %cst_25 [1] : vector<8x8xf32> to vector<8xf32>
    %79 = vector.shape_cast %78 : vector<8xf32> to vector<8x1xf32>
    %80 = tpu.iota {dimensions = array<i32: 1>} : vector<8x12xi32>
    %c0_i32 = arith.constant 0 : i32
    %81 = vector.broadcast %c0_i32 : i32 to vector<8x12xi32>
    %82 = arith.cmpi eq, %80, %81 : vector<8x12xi32>
    %cst_26 = arith.constant 0.000000e+00 : f32
    %83 = vector.shape_cast %73 : vector<8x1xf32> to vector<8x1xf32>
    %84 = vector.broadcast %83 : vector<8x1xf32> to vector<8x12xf32>
    %85 = vector.broadcast %cst_26 : f32 to vector<8x12xf32>
    %86 = arith.select %82, %84, %85 : vector<8x12xi1>, vector<8x12xf32>
    %c4_i32 = arith.constant 4 : i32
    %87 = vector.broadcast %c4_i32 : i32 to vector<8x12xi32>
    %88 = arith.cmpi eq, %80, %87 : vector<8x12xi32>
    %cst_27 = arith.constant 0.000000e+00 : f32
    %89 = vector.shape_cast %76 : vector<8x1xf32> to vector<8x1xf32>
    %90 = vector.broadcast %89 : vector<8x1xf32> to vector<8x12xf32>
    %91 = vector.broadcast %cst_27 : f32 to vector<8x12xf32>
    %92 = arith.select %88, %90, %91 : vector<8x12xi1>, vector<8x12xf32>
    %93 = arith.addf %86, %92 : vector<8x12xf32>
    %c8_i32 = arith.constant 8 : i32
    %94 = vector.broadcast %c8_i32 : i32 to vector<8x12xi32>
    %95 = arith.cmpi eq, %80, %94 : vector<8x12xi32>
    %cst_28 = arith.constant 0.000000e+00 : f32
    %96 = vector.shape_cast %79 : vector<8x1xf32> to vector<8x1xf32>
    %97 = vector.broadcast %96 : vector<8x1xf32> to vector<8x12xf32>
    %98 = vector.broadcast %cst_28 : f32 to vector<8x12xf32>
    %99 = arith.select %95, %97, %98 : vector<8x12xi1>, vector<8x12xf32>
    %100 = arith.addf %93, %99 : vector<8x12xf32>
    %101 = arith.addf %70, %100 : vector<8x12xf32>
    %102 = arith.truncf %101 : vector<8x12xf32> to vector<8x12xbf16>
    %c0_29 = arith.constant 0 : index
    %c0_30 = arith.constant 0 : index
    %103 = vector.load %arg7[%c0_29, %c0_30] : memref<12x6xbf16, #tpu.memory_space<vmem>>, vector<12x6xbf16>
    %cst_31 = arith.constant dense<0.000000e+00> : vector<8x6xf32>
    %104 = tpu.matmul %102, %103, %cst_31 {dimension_numbers = #tpu.dot_dimension_numbers<[1], [0], [0], [1], [0, 0, 1, 1], [], []>} : vector<8x12xbf16>, vector<12x6xbf16>, vector<8x6xf32> -> vector<8x6xf32>
    %105 = arith.truncf %104 : vector<8x6xf32> to vector<8x6xbf16>
    %c0_32 = arith.constant 0 : index
    %c0_33 = arith.constant 0 : index
    %106 = vector.load %arg8[%c0_32, %c0_33] : memref<6x24xbf16, #tpu.memory_space<vmem>>, vector<6x24xbf16>
    %cst_34 = arith.constant dense<0.000000e+00> : vector<8x24xf32>
    %107 = tpu.matmul %105, %106, %cst_34 {dimension_numbers = #tpu.dot_dimension_numbers<[1], [0], [0], [1], [0, 0, 1, 1], [], []>} : vector<8x6xbf16>, vector<6x24xbf16>, vector<8x24xf32> -> vector<8x24xf32>
    %108 = arith.truncf %29 : vector<8x12xf32> to vector<8x12xbf16>
    %c0_35 = arith.constant 0 : index
    %c0_36 = arith.constant 0 : index
    %109 = vector.load %arg9[%c0_35, %c0_36] : memref<12x24xbf16, #tpu.memory_space<vmem>>, vector<12x24xbf16>
    %cst_37 = arith.constant dense<0.000000e+00> : vector<8x24xf32>
    %110 = tpu.matmul %108, %109, %cst_37 {dimension_numbers = #tpu.dot_dimension_numbers<[1], [0], [0], [1], [0, 0, 1, 1], [], []>} : vector<8x12xbf16>, vector<12x24xbf16>, vector<8x24xf32> -> vector<8x24xf32>
    %111 = arith.addf %107, %110 : vector<8x24xf32>
    %112 = vector.extract_strided_slice %111 {offsets = [0, 0], sizes = [8, 8], strides = [1, 1]} : vector<8x24xf32> to vector<8x8xf32>
    %113 = vector.extract_strided_slice %111 {offsets = [0, 8], sizes = [8, 8], strides = [1, 1]} : vector<8x24xf32> to vector<8x8xf32>
    %114 = vector.extract_strided_slice %111 {offsets = [0, 16], sizes = [8, 8], strides = [1, 1]} : vector<8x24xf32> to vector<8x8xf32>
    %115 = arith.mulf %112, %112 : vector<8x8xf32>
    %116 = arith.mulf %113, %113 : vector<8x8xf32>
    %117 = arith.addf %115, %116 : vector<8x8xf32>
    %118 = arith.mulf %114, %114 : vector<8x8xf32>
    %119 = arith.addf %117, %118 : vector<8x8xf32>
    %cst_38 = arith.constant 9.99999997E-7 : f32
    %120 = vector.broadcast %cst_38 : f32 to vector<8x8xf32>
    %121 = arith.addf %119, %120 : vector<8x8xf32>
    %122 = math.sqrt %121 : vector<8x8xf32>
    %c0_39 = arith.constant 0 : index
    %c0_40 = arith.constant 0 : index
    %123 = vector.load %arg10[%c0_39, %c0_40] : memref<1x8xf32, #tpu.memory_space<vmem>>, vector<1x8xf32>
    %124 = vector.broadcast %123 : vector<1x8xf32> to vector<8x8xf32>
    %125 = arith.addf %122, %124 : vector<8x8xf32>
    %cst_41 = arith.constant 0.000000e+00 : f32
    %126 = vector.broadcast %cst_41 : f32 to vector<8x8xf32>
    %127 = arith.maximumf %125, %126 : vector<8x8xf32>
    %128 = tpu.reciprocal %122 {approx = true} : vector<8x8xf32> -> vector<8x8xf32>
    %129 = arith.mulf %127, %128 : vector<8x8xf32>
    %130 = tpu.concatenate %129, %129, %129 in 1 : vector<8x8xf32>, vector<8x8xf32>, vector<8x8xf32> -> vector<8x24xf32>
    %131 = arith.mulf %111, %130 : vector<8x24xf32>
    %132 = vector.extract_strided_slice %131 {offsets = [0, 0], sizes = [8, 8], strides = [1, 1]} : vector<8x24xf32> to vector<8x8xf32>
    %133 = vector.extract_strided_slice %131 {offsets = [0, 8], sizes = [8, 8], strides = [1, 1]} : vector<8x24xf32> to vector<8x8xf32>
    %134 = vector.extract_strided_slice %131 {offsets = [0, 16], sizes = [8, 8], strides = [1, 1]} : vector<8x24xf32> to vector<8x8xf32>
    %135 = arith.mulf %132, %132 : vector<8x8xf32>
    %136 = arith.mulf %133, %133 : vector<8x8xf32>
    %137 = arith.addf %135, %136 : vector<8x8xf32>
    %138 = arith.mulf %134, %134 : vector<8x8xf32>
    %139 = arith.addf %137, %138 : vector<8x8xf32>
    %cst_42 = arith.constant 9.99999997E-7 : f32
    %140 = vector.broadcast %cst_42 : f32 to vector<8x8xf32>
    %141 = arith.addf %139, %140 : vector<8x8xf32>
    %142 = math.sqrt %141 : vector<8x8xf32>
    %143 = arith.truncf %142 : vector<8x8xf32> to vector<8x8xbf16>
    %c0_43 = arith.constant 0 : index
    %c0_44 = arith.constant 0 : index
    %144 = vector.load %arg11[%c0_43, %c0_44] : memref<8x2xbf16, #tpu.memory_space<vmem>>, vector<8x2xbf16>
    %cst_45 = arith.constant dense<0.000000e+00> : vector<8x2xf32>
    %145 = tpu.matmul %143, %144, %cst_45 {dimension_numbers = #tpu.dot_dimension_numbers<[1], [0], [0], [1], [0, 0, 1, 1], [], []>} : vector<8x8xbf16>, vector<8x2xbf16>, vector<8x2xf32> -> vector<8x2xf32>
    %c0_46 = arith.constant 0 : index
    %c0_47 = arith.constant 0 : index
    %146 = vector.load %arg12[%c0_46, %c0_47] : memref<8x2xbf16, #tpu.memory_space<vmem>>, vector<8x2xbf16>
    %cst_48 = arith.constant dense<0.000000e+00> : vector<8x2xf32>
    %147 = tpu.matmul %143, %146, %cst_48 {dimension_numbers = #tpu.dot_dimension_numbers<[1], [0], [0], [1], [0, 0, 1, 1], [], []>} : vector<8x8xbf16>, vector<8x2xbf16>, vector<8x2xf32> -> vector<8x2xf32>
    %148 = arith.truncf %145 : vector<8x2xf32> to vector<8x2xbf16>
    %149 = arith.truncf %147 : vector<8x2xf32> to vector<8x2xbf16>
    %cst_49 = arith.constant dense<0.000000e+00> : vector<8x8xf32>
    %150 = tpu.matmul %148, %149, %cst_49 {dimension_numbers = #tpu.dot_dimension_numbers<[1], [1], [0], [0], [0, 0, 1, 0], [], []>} : vector<8x2xbf16>, vector<8x2xbf16>, vector<8x8xf32> -> vector<8x8xf32>
    %c0_50 = arith.constant 0 : index
    %c0_51 = arith.constant 0 : index
    %151 = vector.load %arg13[%c0_50, %c0_51] : memref<2x1xbf16, #tpu.memory_space<vmem>>, vector<2x1xbf16>
    %cst_52 = arith.constant dense<0.000000e+00> : vector<8x1xf32>
    %152 = tpu.matmul %148, %151, %cst_52 {dimension_numbers = #tpu.dot_dimension_numbers<[1], [0], [0], [1], [0, 0, 1, 1], [], []>} : vector<8x2xbf16>, vector<2x1xbf16>, vector<8x1xf32> -> vector<8x1xf32>
    %153 = vector.broadcast %152 : vector<8x1xf32> to vector<8x8xf32>
    %154 = arith.mulf %24, %153 : vector<8x8xf32>
    %155 = arith.addf %150, %154 : vector<8x8xf32>
    %cst_53 = arith.constant 0.707106769 : f32
    %156 = vector.broadcast %cst_53 : f32 to vector<8x8xf32>
    %157 = arith.mulf %155, %156 : vector<8x8xf32>
    %cst_54 = arith.constant -1.000000e+30 : f32
    %158 = vector.broadcast %cst_54 : f32 to vector<8x8xf32>
    %159 = arith.select %27, %158, %157 : vector<8x8xi1>, vector<8x8xf32>
    %cst_55 = arith.constant dense<0xFF800000> : vector<8xf32>
    %160 = vector.multi_reduction <maximumf>, %159, %cst_55 [1] : vector<8x8xf32> to vector<8xf32>
    %161 = vector.shape_cast %160 : vector<8xf32> to vector<8x1xf32>
    %162 = vector.broadcast %161 : vector<8x1xf32> to vector<8x8xf32>
    %163 = arith.subf %159, %162 : vector<8x8xf32>
    %164 = math.exp %163 : vector<8x8xf32>
    %cst_56 = arith.constant dense<0.000000e+00> : vector<8xf32>
    %165 = vector.multi_reduction <add>, %164, %cst_56 [1] : vector<8x8xf32> to vector<8xf32>
    %166 = vector.shape_cast %165 : vector<8xf32> to vector<8x1xf32>
    %167 = tpu.reciprocal %166 {approx = true} : vector<8x1xf32> -> vector<8x1xf32>
    %168 = vector.broadcast %167 : vector<8x1xf32> to vector<8x8xf32>
    %169 = arith.mulf %164, %168 : vector<8x8xf32>
    %170 = arith.truncf %169 : vector<8x8xf32> to vector<8x8xbf16>
    %171 = arith.truncf %131 : vector<8x24xf32> to vector<8x24xbf16>
    %cst_57 = arith.constant dense<0.000000e+00> : vector<8x24xf32>
    %172 = tpu.matmul %170, %171, %cst_57 {dimension_numbers = #tpu.dot_dimension_numbers<[1], [0], [0], [1], [0, 0, 1, 1], [], []>} : vector<8x8xbf16>, vector<8x24xbf16>, vector<8x24xf32> -> vector<8x24xf32>
    %173 = arith.mulf %169, %8 : vector<8x8xf32>
    %cst_58 = arith.constant dense<0.000000e+00> : vector<8xf32>
    %174 = vector.multi_reduction <add>, %173, %cst_58 [1] : vector<8x8xf32> to vector<8xf32>
    %175 = vector.shape_cast %174 : vector<8xf32> to vector<8x1xf32>
    %176 = arith.mulf %169, %13 : vector<8x8xf32>
    %cst_59 = arith.constant dense<0.000000e+00> : vector<8xf32>
    %177 = vector.multi_reduction <add>, %176, %cst_59 [1] : vector<8x8xf32> to vector<8xf32>
    %178 = vector.shape_cast %177 : vector<8xf32> to vector<8x1xf32>
    %179 = arith.mulf %169, %18 : vector<8x8xf32>
    %cst_60 = arith.constant dense<0.000000e+00> : vector<8xf32>
    %180 = vector.multi_reduction <add>, %179, %cst_60 [1] : vector<8x8xf32> to vector<8xf32>
    %181 = vector.shape_cast %180 : vector<8xf32> to vector<8x1xf32>
    %182 = tpu.iota {dimensions = array<i32: 1>} : vector<8x24xi32>
    %c0_i32_61 = arith.constant 0 : i32
    %183 = vector.broadcast %c0_i32_61 : i32 to vector<8x24xi32>
    %184 = arith.cmpi eq, %182, %183 : vector<8x24xi32>
    %cst_62 = arith.constant 0.000000e+00 : f32
    %185 = vector.shape_cast %175 : vector<8x1xf32> to vector<8x1xf32>
    %186 = vector.broadcast %185 : vector<8x1xf32> to vector<8x24xf32>
    %187 = vector.broadcast %cst_62 : f32 to vector<8x24xf32>
    %188 = arith.select %184, %186, %187 : vector<8x24xi1>, vector<8x24xf32>
    %c8_i32_63 = arith.constant 8 : i32
    %189 = vector.broadcast %c8_i32_63 : i32 to vector<8x24xi32>
    %190 = arith.cmpi eq, %182, %189 : vector<8x24xi32>
    %cst_64 = arith.constant 0.000000e+00 : f32
    %191 = vector.shape_cast %178 : vector<8x1xf32> to vector<8x1xf32>
    %192 = vector.broadcast %191 : vector<8x1xf32> to vector<8x24xf32>
    %193 = vector.broadcast %cst_64 : f32 to vector<8x24xf32>
    %194 = arith.select %190, %192, %193 : vector<8x24xi1>, vector<8x24xf32>
    %195 = arith.addf %188, %194 : vector<8x24xf32>
    %c16_i32 = arith.constant 16 : i32
    %196 = vector.broadcast %c16_i32 : i32 to vector<8x24xi32>
    %197 = arith.cmpi eq, %182, %196 : vector<8x24xi32>
    %cst_65 = arith.constant 0.000000e+00 : f32
    %198 = vector.shape_cast %181 : vector<8x1xf32> to vector<8x1xf32>
    %199 = vector.broadcast %198 : vector<8x1xf32> to vector<8x24xf32>
    %200 = vector.broadcast %cst_65 : f32 to vector<8x24xf32>
    %201 = arith.select %197, %199, %200 : vector<8x24xi1>, vector<8x24xf32>
    %202 = arith.addf %195, %201 : vector<8x24xf32>
    %203 = arith.addf %172, %202 : vector<8x24xf32>
    %204 = arith.truncf %203 : vector<8x24xf32> to vector<8x24xbf16>
    %c0_66 = arith.constant 0 : index
    %c0_67 = arith.constant 0 : index
    %205 = vector.load %arg14[%c0_66, %c0_67] : memref<24x6xbf16, #tpu.memory_space<vmem>>, vector<24x6xbf16>
    %cst_68 = arith.constant dense<0.000000e+00> : vector<8x6xf32>
    %206 = tpu.matmul %204, %205, %cst_68 {dimension_numbers = #tpu.dot_dimension_numbers<[1], [0], [0], [1], [0, 0, 1, 1], [], []>} : vector<8x24xbf16>, vector<24x6xbf16>, vector<8x6xf32> -> vector<8x6xf32>
    %207 = arith.truncf %206 : vector<8x6xf32> to vector<8x6xbf16>
    %c0_69 = arith.constant 0 : index
    %c0_70 = arith.constant 0 : index
    %208 = vector.load %arg15[%c0_69, %c0_70] : memref<6x24xbf16, #tpu.memory_space<vmem>>, vector<6x24xbf16>
    %cst_71 = arith.constant dense<0.000000e+00> : vector<8x24xf32>
    %209 = tpu.matmul %207, %208, %cst_71 {dimension_numbers = #tpu.dot_dimension_numbers<[1], [0], [0], [1], [0, 0, 1, 1], [], []>} : vector<8x6xbf16>, vector<6x24xbf16>, vector<8x24xf32> -> vector<8x24xf32>
    %210 = arith.truncf %131 : vector<8x24xf32> to vector<8x24xbf16>
    %c0_72 = arith.constant 0 : index
    %c0_73 = arith.constant 0 : index
    %211 = vector.load %arg16[%c0_72, %c0_73] : memref<24x24xbf16, #tpu.memory_space<vmem>>, vector<24x24xbf16>
    %cst_74 = arith.constant dense<0.000000e+00> : vector<8x24xf32>
    %212 = tpu.matmul %210, %211, %cst_74 {dimension_numbers = #tpu.dot_dimension_numbers<[1], [0], [0], [1], [0, 0, 1, 1], [], []>} : vector<8x24xbf16>, vector<24x24xbf16>, vector<8x24xf32> -> vector<8x24xf32>
    %213 = arith.addf %209, %212 : vector<8x24xf32>
    %214 = vector.extract_strided_slice %213 {offsets = [0, 0], sizes = [8, 8], strides = [1, 1]} : vector<8x24xf32> to vector<8x8xf32>
    %215 = vector.extract_strided_slice %213 {offsets = [0, 8], sizes = [8, 8], strides = [1, 1]} : vector<8x24xf32> to vector<8x8xf32>
    %216 = vector.extract_strided_slice %213 {offsets = [0, 16], sizes = [8, 8], strides = [1, 1]} : vector<8x24xf32> to vector<8x8xf32>
    %217 = arith.mulf %214, %214 : vector<8x8xf32>
    %218 = arith.mulf %215, %215 : vector<8x8xf32>
    %219 = arith.addf %217, %218 : vector<8x8xf32>
    %220 = arith.mulf %216, %216 : vector<8x8xf32>
    %221 = arith.addf %219, %220 : vector<8x8xf32>
    %cst_75 = arith.constant 9.99999997E-7 : f32
    %222 = vector.broadcast %cst_75 : f32 to vector<8x8xf32>
    %223 = arith.addf %221, %222 : vector<8x8xf32>
    %224 = math.sqrt %223 : vector<8x8xf32>
    %c0_76 = arith.constant 0 : index
    %c0_77 = arith.constant 0 : index
    %225 = vector.load %arg17[%c0_76, %c0_77] : memref<1x8xf32, #tpu.memory_space<vmem>>, vector<1x8xf32>
    %226 = vector.broadcast %225 : vector<1x8xf32> to vector<8x8xf32>
    %227 = arith.addf %224, %226 : vector<8x8xf32>
    %cst_78 = arith.constant 0.000000e+00 : f32
    %228 = vector.broadcast %cst_78 : f32 to vector<8x8xf32>
    %229 = arith.maximumf %227, %228 : vector<8x8xf32>
    %230 = tpu.reciprocal %224 {approx = true} : vector<8x8xf32> -> vector<8x8xf32>
    %231 = arith.mulf %229, %230 : vector<8x8xf32>
    %232 = tpu.concatenate %231, %231, %231 in 1 : vector<8x8xf32>, vector<8x8xf32>, vector<8x8xf32> -> vector<8x24xf32>
    %233 = arith.mulf %213, %232 : vector<8x24xf32>
    %234 = vector.extract_strided_slice %233 {offsets = [0, 0], sizes = [8, 8], strides = [1, 1]} : vector<8x24xf32> to vector<8x8xf32>
    %235 = vector.extract_strided_slice %233 {offsets = [0, 8], sizes = [8, 8], strides = [1, 1]} : vector<8x24xf32> to vector<8x8xf32>
    %236 = vector.extract_strided_slice %233 {offsets = [0, 16], sizes = [8, 8], strides = [1, 1]} : vector<8x24xf32> to vector<8x8xf32>
    %237 = arith.mulf %234, %234 : vector<8x8xf32>
    %238 = arith.mulf %235, %235 : vector<8x8xf32>
    %239 = arith.addf %237, %238 : vector<8x8xf32>
    %240 = arith.mulf %236, %236 : vector<8x8xf32>
    %241 = arith.addf %239, %240 : vector<8x8xf32>
    %cst_79 = arith.constant 9.99999997E-7 : f32
    %242 = vector.broadcast %cst_79 : f32 to vector<8x8xf32>
    %243 = arith.addf %241, %242 : vector<8x8xf32>
    %244 = math.sqrt %243 : vector<8x8xf32>
    %245 = arith.truncf %244 : vector<8x8xf32> to vector<8x8xbf16>
    %c0_80 = arith.constant 0 : index
    %c0_81 = arith.constant 0 : index
    %246 = vector.load %arg18[%c0_80, %c0_81] : memref<8x2xbf16, #tpu.memory_space<vmem>>, vector<8x2xbf16>
    %cst_82 = arith.constant dense<0.000000e+00> : vector<8x2xf32>
    %247 = tpu.matmul %245, %246, %cst_82 {dimension_numbers = #tpu.dot_dimension_numbers<[1], [0], [0], [1], [0, 0, 1, 1], [], []>} : vector<8x8xbf16>, vector<8x2xbf16>, vector<8x2xf32> -> vector<8x2xf32>
    %c0_83 = arith.constant 0 : index
    %c0_84 = arith.constant 0 : index
    %248 = vector.load %arg19[%c0_83, %c0_84] : memref<8x2xbf16, #tpu.memory_space<vmem>>, vector<8x2xbf16>
    %cst_85 = arith.constant dense<0.000000e+00> : vector<8x2xf32>
    %249 = tpu.matmul %245, %248, %cst_85 {dimension_numbers = #tpu.dot_dimension_numbers<[1], [0], [0], [1], [0, 0, 1, 1], [], []>} : vector<8x8xbf16>, vector<8x2xbf16>, vector<8x2xf32> -> vector<8x2xf32>
    %250 = arith.truncf %247 : vector<8x2xf32> to vector<8x2xbf16>
    %251 = arith.truncf %249 : vector<8x2xf32> to vector<8x2xbf16>
    %cst_86 = arith.constant dense<0.000000e+00> : vector<8x8xf32>
    %252 = tpu.matmul %250, %251, %cst_86 {dimension_numbers = #tpu.dot_dimension_numbers<[1], [1], [0], [0], [0, 0, 1, 0], [], []>} : vector<8x2xbf16>, vector<8x2xbf16>, vector<8x8xf32> -> vector<8x8xf32>
    %c0_87 = arith.constant 0 : index
    %c0_88 = arith.constant 0 : index
    %253 = vector.load %arg20[%c0_87, %c0_88] : memref<2x1xbf16, #tpu.memory_space<vmem>>, vector<2x1xbf16>
    %cst_89 = arith.constant dense<0.000000e+00> : vector<8x1xf32>
    %254 = tpu.matmul %250, %253, %cst_89 {dimension_numbers = #tpu.dot_dimension_numbers<[1], [0], [0], [1], [0, 0, 1, 1], [], []>} : vector<8x2xbf16>, vector<2x1xbf16>, vector<8x1xf32> -> vector<8x1xf32>
    %255 = vector.broadcast %254 : vector<8x1xf32> to vector<8x8xf32>
    %256 = arith.mulf %24, %255 : vector<8x8xf32>
    %257 = arith.addf %252, %256 : vector<8x8xf32>
    %cst_90 = arith.constant 0.707106769 : f32
    %258 = vector.broadcast %cst_90 : f32 to vector<8x8xf32>
    %259 = arith.mulf %257, %258 : vector<8x8xf32>
    %cst_91 = arith.constant -1.000000e+30 : f32
    %260 = vector.broadcast %cst_91 : f32 to vector<8x8xf32>
    %261 = arith.select %27, %260, %259 : vector<8x8xi1>, vector<8x8xf32>
    %cst_92 = arith.constant dense<0xFF800000> : vector<8xf32>
    %262 = vector.multi_reduction <maximumf>, %261, %cst_92 [1] : vector<8x8xf32> to vector<8xf32>
    %263 = vector.shape_cast %262 : vector<8xf32> to vector<8x1xf32>
    %264 = vector.broadcast %263 : vector<8x1xf32> to vector<8x8xf32>
    %265 = arith.subf %261, %264 : vector<8x8xf32>
    %266 = math.exp %265 : vector<8x8xf32>
    %cst_93 = arith.constant dense<0.000000e+00> : vector<8xf32>
    %267 = vector.multi_reduction <add>, %266, %cst_93 [1] : vector<8x8xf32> to vector<8xf32>
    %268 = vector.shape_cast %267 : vector<8xf32> to vector<8x1xf32>
    %269 = tpu.reciprocal %268 {approx = true} : vector<8x1xf32> -> vector<8x1xf32>
    %270 = vector.broadcast %269 : vector<8x1xf32> to vector<8x8xf32>
    %271 = arith.mulf %266, %270 : vector<8x8xf32>
    %272 = arith.truncf %271 : vector<8x8xf32> to vector<8x8xbf16>
    %273 = arith.truncf %233 : vector<8x24xf32> to vector<8x24xbf16>
    %cst_94 = arith.constant dense<0.000000e+00> : vector<8x24xf32>
    %274 = tpu.matmul %272, %273, %cst_94 {dimension_numbers = #tpu.dot_dimension_numbers<[1], [0], [0], [1], [0, 0, 1, 1], [], []>} : vector<8x8xbf16>, vector<8x24xbf16>, vector<8x24xf32> -> vector<8x24xf32>
    %275 = arith.mulf %271, %8 : vector<8x8xf32>
    %cst_95 = arith.constant dense<0.000000e+00> : vector<8xf32>
    %276 = vector.multi_reduction <add>, %275, %cst_95 [1] : vector<8x8xf32> to vector<8xf32>
    %277 = vector.shape_cast %276 : vector<8xf32> to vector<8x1xf32>
    %278 = arith.mulf %271, %13 : vector<8x8xf32>
    %cst_96 = arith.constant dense<0.000000e+00> : vector<8xf32>
    %279 = vector.multi_reduction <add>, %278, %cst_96 [1] : vector<8x8xf32> to vector<8xf32>
    %280 = vector.shape_cast %279 : vector<8xf32> to vector<8x1xf32>
    %281 = arith.mulf %271, %18 : vector<8x8xf32>
    %cst_97 = arith.constant dense<0.000000e+00> : vector<8xf32>
    %282 = vector.multi_reduction <add>, %281, %cst_97 [1] : vector<8x8xf32> to vector<8xf32>
    %283 = vector.shape_cast %282 : vector<8xf32> to vector<8x1xf32>
    %284 = tpu.iota {dimensions = array<i32: 1>} : vector<8x24xi32>
    %c0_i32_98 = arith.constant 0 : i32
    %285 = vector.broadcast %c0_i32_98 : i32 to vector<8x24xi32>
    %286 = arith.cmpi eq, %284, %285 : vector<8x24xi32>
    %cst_99 = arith.constant 0.000000e+00 : f32
    %287 = vector.shape_cast %277 : vector<8x1xf32> to vector<8x1xf32>
    %288 = vector.broadcast %287 : vector<8x1xf32> to vector<8x24xf32>
    %289 = vector.broadcast %cst_99 : f32 to vector<8x24xf32>
    %290 = arith.select %286, %288, %289 : vector<8x24xi1>, vector<8x24xf32>
    %c8_i32_100 = arith.constant 8 : i32
    %291 = vector.broadcast %c8_i32_100 : i32 to vector<8x24xi32>
    %292 = arith.cmpi eq, %284, %291 : vector<8x24xi32>
    %cst_101 = arith.constant 0.000000e+00 : f32
    %293 = vector.shape_cast %280 : vector<8x1xf32> to vector<8x1xf32>
    %294 = vector.broadcast %293 : vector<8x1xf32> to vector<8x24xf32>
    %295 = vector.broadcast %cst_101 : f32 to vector<8x24xf32>
    %296 = arith.select %292, %294, %295 : vector<8x24xi1>, vector<8x24xf32>
    %297 = arith.addf %290, %296 : vector<8x24xf32>
    %c16_i32_102 = arith.constant 16 : i32
    %298 = vector.broadcast %c16_i32_102 : i32 to vector<8x24xi32>
    %299 = arith.cmpi eq, %284, %298 : vector<8x24xi32>
    %cst_103 = arith.constant 0.000000e+00 : f32
    %300 = vector.shape_cast %283 : vector<8x1xf32> to vector<8x1xf32>
    %301 = vector.broadcast %300 : vector<8x1xf32> to vector<8x24xf32>
    %302 = vector.broadcast %cst_103 : f32 to vector<8x24xf32>
    %303 = arith.select %299, %301, %302 : vector<8x24xi1>, vector<8x24xf32>
    %304 = arith.addf %297, %303 : vector<8x24xf32>
    %305 = arith.addf %274, %304 : vector<8x24xf32>
    %306 = arith.truncf %305 : vector<8x24xf32> to vector<8x24xbf16>
    %c0_104 = arith.constant 0 : index
    %c0_105 = arith.constant 0 : index
    %307 = vector.load %arg21[%c0_104, %c0_105] : memref<24x6xbf16, #tpu.memory_space<vmem>>, vector<24x6xbf16>
    %cst_106 = arith.constant dense<0.000000e+00> : vector<8x6xf32>
    %308 = tpu.matmul %306, %307, %cst_106 {dimension_numbers = #tpu.dot_dimension_numbers<[1], [0], [0], [1], [0, 0, 1, 1], [], []>} : vector<8x24xbf16>, vector<24x6xbf16>, vector<8x6xf32> -> vector<8x6xf32>
    %309 = arith.truncf %308 : vector<8x6xf32> to vector<8x6xbf16>
    %c0_107 = arith.constant 0 : index
    %c0_108 = arith.constant 0 : index
    %310 = vector.load %arg22[%c0_107, %c0_108] : memref<6x6xbf16, #tpu.memory_space<vmem>>, vector<6x6xbf16>
    %cst_109 = arith.constant dense<0.000000e+00> : vector<8x6xf32>
    %311 = tpu.matmul %309, %310, %cst_109 {dimension_numbers = #tpu.dot_dimension_numbers<[1], [0], [0], [1], [0, 0, 1, 1], [], []>} : vector<8x6xbf16>, vector<6x6xbf16>, vector<8x6xf32> -> vector<8x6xf32>
    %312 = arith.truncf %233 : vector<8x24xf32> to vector<8x24xbf16>
    %c0_110 = arith.constant 0 : index
    %c0_111 = arith.constant 0 : index
    %313 = vector.load %arg23[%c0_110, %c0_111] : memref<24x6xbf16, #tpu.memory_space<vmem>>, vector<24x6xbf16>
    %cst_112 = arith.constant dense<0.000000e+00> : vector<8x6xf32>
    %314 = tpu.matmul %312, %313, %cst_112 {dimension_numbers = #tpu.dot_dimension_numbers<[1], [0], [0], [1], [0, 0, 1, 1], [], []>} : vector<8x24xbf16>, vector<24x6xbf16>, vector<8x6xf32> -> vector<8x6xf32>
    %315 = arith.addf %311, %314 : vector<8x6xf32>
    %c0_113 = arith.constant 0 : index
    %c0_114 = arith.constant 0 : index
    %c0_115 = arith.constant 0 : index
    %316 = vector.load %arg25[%c0_113, %c0_114, %c0_115] : memref<1x8x6xf32, #tpu.memory_space<vmem>>, vector<1x8x6xf32>
    %317 = vector.shape_cast %316 : vector<1x8x6xf32> to vector<8x6xf32>
    %318 = vector.shape_cast %315 : vector<8x6xf32> to vector<1x8x6xf32>
    tpu.vector_store %arg25[%c0_113, %c0_114, %c0_115], %318 {strides = array<i32>} : memref<1x8x6xf32, #tpu.memory_space<vmem>>, vector<1x8x6xf32>,
    return
  }
  func.func @transform_0(%arg0: i32) -> (i32, i32, i32) {
    %c0_i32 = arith.constant 0 : i32
    %c0_i32_0 = arith.constant 0 : i32
    %c0_i32_1 = arith.constant 0 : i32
    return %arg0, %c0_i32, %c0_i32_0 : i32, i32, i32
  }
  func.func @transform_1(%arg0: i32) -> (i32, i32, i32) {
    %c0_i32 = arith.constant 0 : i32
    %c0_i32_0 = arith.constant 0 : i32
    %c0_i32_1 = arith.constant 0 : i32
    return %arg0, %c0_i32, %c0_i32_0 : i32, i32, i32
  }
  func.func @transform_2(%arg0: i32) -> (i32, i32, i32) {
    %c0_i32 = arith.constant 0 : i32
    %c0_i32_0 = arith.constant 0 : i32
    %c0_i32_1 = arith.constant 0 : i32
    return %arg0, %c0_i32, %c0_i32_0 : i32, i32, i32
  }
  func.func @transform_3(%arg0: i32) -> (i32, i32) {
    %c0_i32 = arith.constant 0 : i32
    %c0_i32_0 = arith.constant 0 : i32
    %c0_i32_1 = arith.constant 0 : i32
    return %c0_i32, %c0_i32_0 : i32, i32
  }
  func.func @transform_4(%arg0: i32) -> (i32, i32) {
    %c0_i32 = arith.constant 0 : i32
    %c0_i32_0 = arith.constant 0 : i32
    %c0_i32_1 = arith.constant 0 : i32
    return %c0_i32, %c0_i32_0 : i32, i32
  }
  func.func @transform_5(%arg0: i32) -> (i32, i32) {
    %c0_i32 = arith.constant 0 : i32
    %c0_i32_0 = arith.constant 0 : i32
    %c0_i32_1 = arith.constant 0 : i32
    return %c0_i32, %c0_i32_0 : i32, i32
  }
  func.func @transform_6(%arg0: i32) -> (i32, i32) {
    %c0_i32 = arith.constant 0 : i32
    %c0_i32_0 = arith.constant 0 : i32
    %c0_i32_1 = arith.constant 0 : i32
    return %c0_i32, %c0_i32_0 : i32, i32
  }
  func.func @transform_7(%arg0: i32) -> (i32, i32) {
    %c0_i32 = arith.constant 0 : i32
    %c0_i32_0 = arith.constant 0 : i32
    %c0_i32_1 = arith.constant 0 : i32
    return %c0_i32, %c0_i32_0 : i32, i32
  }
  func.func @transform_8(%arg0: i32) -> (i32, i32) {
    %c0_i32 = arith.constant 0 : i32
    %c0_i32_0 = arith.constant 0 : i32
    %c0_i32_1 = arith.constant 0 : i32
    return %c0_i32, %c0_i32_0 : i32, i32
  }
  func.func @transform_9(%arg0: i32) -> (i32, i32) {
    %c0_i32 = arith.constant 0 : i32
    %c0_i32_0 = arith.constant 0 : i32
    %c0_i32_1 = arith.constant 0 : i32
    return %c0_i32, %c0_i32_0 : i32, i32
  }
  func.func @transform_10(%arg0: i32) -> (i32, i32) {
    %c0_i32 = arith.constant 0 : i32
    %c0_i32_0 = arith.constant 0 : i32
    %c0_i32_1 = arith.constant 0 : i32
    return %c0_i32, %c0_i32_0 : i32, i32
  }
  func.func @transform_11(%arg0: i32) -> (i32, i32) {
    %c0_i32 = arith.constant 0 : i32
    %c0_i32_0 = arith.constant 0 : i32
    %c0_i32_1 = arith.constant 0 : i32
    return %c0_i32, %c0_i32_0 : i32, i32
  }
  func.func @transform_12(%arg0: i32) -> (i32, i32) {
    %c0_i32 = arith.constant 0 : i32
    %c0_i32_0 = arith.constant 0 : i32
    %c0_i32_1 = arith.constant 0 : i32
    return %c0_i32, %c0_i32_0 : i32, i32
  }
  func.func @transform_13(%arg0: i32) -> (i32, i32) {
    %c0_i32 = arith.constant 0 : i32
    %c0_i32_0 = arith.constant 0 : i32
    %c0_i32_1 = arith.constant 0 : i32
    return %c0_i32, %c0_i32_0 : i32, i32
  }
  func.func @transform_14(%arg0: i32) -> (i32, i32) {
    %c0_i32 = arith.constant 0 : i32
    %c0_i32_0 = arith.constant 0 : i32
    %c0_i32_1 = arith.constant 0 : i32
    return %c0_i32, %c0_i32_0 : i32, i32
  }
  func.func @transform_15(%arg0: i32) -> (i32, i32) {
    %c0_i32 = arith.constant 0 : i32
    %c0_i32_0 = arith.constant 0 : i32
    %c0_i32_1 = arith.constant 0 : i32
    return %c0_i32, %c0_i32_0 : i32, i32
  }
  func.func @transform_16(%arg0: i32) -> (i32, i32) {
    %c0_i32 = arith.constant 0 : i32
    %c0_i32_0 = arith.constant 0 : i32
    %c0_i32_1 = arith.constant 0 : i32
    return %c0_i32, %c0_i32_0 : i32, i32
  }
  func.func @transform_17(%arg0: i32) -> (i32, i32) {
    %c0_i32 = arith.constant 0 : i32
    %c0_i32_0 = arith.constant 0 : i32
    %c0_i32_1 = arith.constant 0 : i32
    return %c0_i32, %c0_i32_0 : i32, i32
  }
  func.func @transform_18(%arg0: i32) -> (i32, i32) {
    %c0_i32 = arith.constant 0 : i32
    %c0_i32_0 = arith.constant 0 : i32
    %c0_i32_1 = arith.constant 0 : i32
    return %c0_i32, %c0_i32_0 : i32, i32
  }
  func.func @transform_19(%arg0: i32) -> (i32, i32) {
    %c0_i32 = arith.constant 0 : i32
    %c0_i32_0 = arith.constant 0 : i32
    %c0_i32_1 = arith.constant 0 : i32
    return %c0_i32, %c0_i32_0 : i32, i32
  }
  func.func @transform_20(%arg0: i32) -> (i32, i32) {
    %c0_i32 = arith.constant 0 : i32
    %c0_i32_0 = arith.constant 0 : i32
    %c0_i32_1 = arith.constant 0 : i32
    return %c0_i32, %c0_i32_0 : i32, i32
  }
  func.func @transform_21(%arg0: i32) -> (i32, i32) {
    %c0_i32 = arith.constant 0 : i32
    %c0_i32_0 = arith.constant 0 : i32
    %c0_i32_1 = arith.constant 0 : i32
    return %c0_i32, %c0_i32_0 : i32, i32
  }
  func.func @transform_22(%arg0: i32) -> (i32, i32) {
    %c0_i32 = arith.constant 0 : i32
    %c0_i32_0 = arith.constant 0 : i32
    %c0_i32_1 = arith.constant 0 : i32
    return %c0_i32, %c0_i32_0 : i32, i32
  }
  func.func @transform_23(%arg0: i32) -> (i32, i32) {
    %c0_i32 = arith.constant 0 : i32
    %c0_i32_0 = arith.constant 0 : i32
    %c0_i32_1 = arith.constant 0 : i32
    return %c0_i32, %c0_i32_0 : i32, i32
  }
  func.func @transform_24(%arg0: i32) -> (i32, i32, i32) {
    %c0_i32 = arith.constant 0 : i32
    %c0_i32_0 = arith.constant 0 : i32
    %c0_i32_1 = arith.constant 0 : i32
    return %arg0, %c0_i32, %c0_i32_0 : i32, i32, i32
  }
}

</mosaic_0001>

<llo_original>
// kernel: tpu_custom_call.1
$region0: #{tpu_custom_call.1}
  #allocation0 [shape = 'u32[]', space=smem, size = 0x4, offset = 0x4, fixed_abs, tag = 'smem constant byte address 0x4 - core index']
  #allocation1 [shape = 'u32[144,128]{1,0:T(1,128)}', space=vmem, size = 0x12000, scoped, tag = 'internal scratch']
  %s0 = inlined_call_operand.vmem [shape: f32[2,8,3], index: 0, kind: input, shape index: {}]
  %s1 = inlined_call_operand.vmem [shape: f32[2,3,8], index: 1, kind: input, shape index: {}]
  %s2 = inlined_call_operand.vmem [shape: f32[2,8,12], index: 2, kind: input, shape index: {}]
  %s3 = inlined_call_operand.vmem [shape: bf16[4,2], index: 3, kind: input, shape index: {}]
  %s4 = inlined_call_operand.vmem [shape: bf16[4,2], index: 4, kind: input, shape index: {}]
  %s5 = inlined_call_operand.vmem [shape: bf16[2,1], index: 5, kind: input, shape index: {}]
  %s6 = inlined_call_operand.vmem [shape: bf16[12,6], index: 6, kind: input, shape index: {}]
  %s7 = inlined_call_operand.vmem [shape: bf16[6,24], index: 7, kind: input, shape index: {}]
  %s8 = inlined_call_operand.vmem [shape: bf16[12,24], index: 8, kind: input, shape index: {}]
  %s9 = inlined_call_operand.vmem [shape: f32[1,8], index: 9, kind: input, shape index: {}]
  %s10 = inlined_call_operand.vmem [shape: bf16[8,2], index: 10, kind: input, shape index: {}]
  %s11 = inlined_call_operand.vmem [shape: bf16[8,2], index: 11, kind: input, shape index: {}]
  %s12 = inlined_call_operand.vmem [shape: bf16[2,1], index: 12, kind: input, shape index: {}]
  %s13 = inlined_call_operand.vmem [shape: bf16[24,6], index: 13, kind: input, shape index: {}]
  %s14 = inlined_call_operand.vmem [shape: bf16[6,24], index: 14, kind: input, shape index: {}]
  %s15 = inlined_call_operand.vmem [shape: bf16[24,24], index: 15, kind: input, shape index: {}]
  %s16 = inlined_call_operand.vmem [shape: f32[1,8], index: 16, kind: input, shape index: {}]
  %s17 = inlined_call_operand.vmem [shape: bf16[8,2], index: 17, kind: input, shape index: {}]
  %s18 = inlined_call_operand.vmem [shape: bf16[8,2], index: 18, kind: input, shape index: {}]
  %s19 = inlined_call_operand.vmem [shape: bf16[2,1], index: 19, kind: input, shape index: {}]
  %s20 = inlined_call_operand.vmem [shape: bf16[24,6], index: 20, kind: input, shape index: {}]
  %s21 = inlined_call_operand.vmem [shape: bf16[6,6], index: 21, kind: input, shape index: {}]
  %s22 = inlined_call_operand.vmem [shape: bf16[24,6], index: 22, kind: input, shape index: {}]
  %s23 = inlined_call_operand.vmem [shape: f32[1,2], index: 23, kind: input, shape index: {}]
  %s24 = inlined_call_operand.vmem [shape: f32[2,8,6], index: 24, kind: output, shape index: {}]
  %s25 = sld [smem:[#allocation0]]
  $region129: #{tpu_custom_call.1} parent=0
    _
  %s27 = ssub.s32 1, %s25
  %s28 = scalar_select 0, %s27, %s25
  loop: start=0, step=1, limit=4
  $region2: #{tpu_custom_call.1} parent=0 // loop_pre_header
    _
  $region3: #{tpu_custom_call.1} parent=0 // loop_header
    %s30 = sphi 0, %s34
    %p31 = scmp.ge.s32.totalorder %s30, 4
    %s40 = sphi 0, %s42
    %s43 = sphi 0, %s40
    %s44 = sphi 0, %s43
    %s60 = sphi 0, %s44
    %s66 = sphi 0, %s68
    %s69 = sphi 0, %s66
    %s70 = sphi 0, %s69
    %s86 = sphi 0, %s70
    %s92 = sphi 0, %s94
    %s95 = sphi 0, %s92
    %s96 = sphi 0, %s95
    %s112 = sphi 0, %s96
    %s116 = sphi 0, %s116
    %s118 = sphi 0, %s116
    %s119 = sphi 0, %s118
    %s133 = sphi 0, %s119
    %s137 = sphi 0, %s137
    %s139 = sphi 0, %s137
    %s140 = sphi 0, %s139
    %s154 = sphi 0, %s140
    %s158 = sphi 0, %s158
    %s160 = sphi 0, %s158
    %s161 = sphi 0, %s160
    %s175 = sphi 0, %s161
    %s179 = sphi 0, %s179
    %s181 = sphi 0, %s179
    %s182 = sphi 0, %s181
    %s196 = sphi 0, %s182
    %s200 = sphi 0, %s200
    %s202 = sphi 0, %s200
    %s203 = sphi 0, %s202
    %s217 = sphi 0, %s203
    %s221 = sphi 0, %s221
    %s223 = sphi 0, %s221
    %s224 = sphi 0, %s223
    %s238 = sphi 0, %s224
    %s242 = sphi 0, %s242
    %s244 = sphi 0, %s242
    %s245 = sphi 0, %s244
    %s259 = sphi 0, %s245
    %s263 = sphi 0, %s263
    %s265 = sphi 0, %s263
    %s266 = sphi 0, %s265
    %s280 = sphi 0, %s266
    %s284 = sphi 0, %s284
    %s286 = sphi 0, %s284
    %s287 = sphi 0, %s286
    %s301 = sphi 0, %s287
    %s305 = sphi 0, %s305
    %s307 = sphi 0, %s305
    %s308 = sphi 0, %s307
    %s322 = sphi 0, %s308
    %s326 = sphi 0, %s326
    %s328 = sphi 0, %s326
    %s329 = sphi 0, %s328
    %s343 = sphi 0, %s329
    %s347 = sphi 0, %s347
    %s349 = sphi 0, %s347
    %s350 = sphi 0, %s349
    %s364 = sphi 0, %s350
    %s368 = sphi 0, %s368
    %s370 = sphi 0, %s368
    %s371 = sphi 0, %s370
    %s385 = sphi 0, %s371
    %s389 = sphi 0, %s389
    %s391 = sphi 0, %s389
    %s392 = sphi 0, %s391
    %s406 = sphi 0, %s392
    %s410 = sphi 0, %s410
    %s412 = sphi 0, %s410
    %s413 = sphi 0, %s412
    %s427 = sphi 0, %s413
    %s431 = sphi 0, %s431
    %s433 = sphi 0, %s431
    %s434 = sphi 0, %s433
    %s448 = sphi 0, %s434
    %s452 = sphi 0, %s452
    %s454 = sphi 0, %s452
    %s455 = sphi 0, %s454
    %s469 = sphi 0, %s455
    %s473 = sphi 0, %s473
    %s475 = sphi 0, %s473
    %s476 = sphi 0, %s475
    %s490 = sphi 0, %s476
    %s494 = sphi 0, %s494
    %s496 = sphi 0, %s494
    %s497 = sphi 0, %s496
    %s511 = sphi 0, %s497
    %s515 = sphi 0, %s515
    %s517 = sphi 0, %s515
    %s518 = sphi 0, %s517
    %s532 = sphi 0, %s518
    %s536 = sphi 0, %s536
    %s538 = sphi 0, %s536
    %s539 = sphi 0, %s538
    %s553 = sphi 0, %s539
    %s559 = sphi 0, %s561
    %s562 = sphi 0, %s559
    %s563 = sphi 0, %s562
    %s579 = sphi 0, %s563
  $region4: #{tpu_custom_call.1} parent=0 // loop_header_branch
    %33 = sbr.rel (%p31) target = $region8
  $region5: #{tpu_custom_call.1} parent=0 // loop_body
    %s35 = ssub.s32 %s30, 1
    %s36 = ssub.s32 %s30, 2
    %s37 = sadd.s32 %s30, 1
    %s38 = ssub.s32 %s30, %s37
    %p39 = scmp.eq.s32.totalorder %s38, 0
    %s41 = sadd.s32 %s40, 1
    %s42 = scalar_select %p39, %s40, %s41
    %p45 = pneg %p39
    %p46 = scmp.eq.s32.totalorder %s30, 1
    %p47 = por %p45, %p46
    %p48 = scmp.ne.s32.totalorder %s40, %s43
    %p49 = scmp.eq.s32.totalorder %s30, 0
    %p50 = por %p48, %p49
    %p51 = scmp.ne.s32.totalorder %s40, %s43
    %p52 = scmp.eq.s32.totalorder %s35, 1
    %p53 = por %p51, %p52
    %p54 = scmp.ne.s32.totalorder %s43, %s44
    %p55 = scmp.eq.s32.totalorder %s35, 0
    %p56 = por %p54, %p55
    %p57 = scmp.ne.s32.totalorder %s43, %s44
    %p58 = scmp.eq.s32.totalorder %s36, 1
    %p59 = por %p57, %p58
    %p61 = scmp.ne.s32.totalorder %s44, %s60
    %p62 = scmp.eq.s32.totalorder %s36, 0
    %p63 = por %p61, %p62
    %s64 = ssub.s32 %s30, %s37
    %p65 = scmp.eq.s32.totalorder %s64, 0
    %s67 = sadd.s32 %s66, 1
    %s68 = scalar_select %p65, %s66, %s67
    %p71 = pneg %p65
    %p72 = scmp.eq.s32.totalorder %s30, 1
    %p73 = por %p71, %p72
    %p74 = scmp.ne.s32.totalorder %s66, %s69
    %p75 = scmp.eq.s32.totalorder %s30, 0
    %p76 = por %p74, %p75
    %p77 = scmp.ne.s32.totalorder %s66, %s69
    %p78 = scmp.eq.s32.totalorder %s35, 1
    %p79 = por %p77, %p78
    %p80 = scmp.ne.s32.totalorder %s69, %s70
    %p81 = scmp.eq.s32.totalorder %s35, 0
    %p82 = por %p80, %p81
    %p83 = scmp.ne.s32.totalorder %s69, %s70
    %p84 = scmp.eq.s32.totalorder %s36, 1
    %p85 = por %p83, %p84
    %p87 = scmp.ne.s32.totalorder %s70, %s86
    %p88 = scmp.eq.s32.totalorder %s36, 0
    %p89 = por %p87, %p88
    %s90 = ssub.s32 %s30, %s37
    %p91 = scmp.eq.s32.totalorder %s90, 0
    %s93 = sadd.s32 %s92, 1
    %s94 = scalar_select %p91, %s92, %s93
    %p97 = pneg %p91
    %p98 = scmp.eq.s32.totalorder %s30, 1
    %p99 = por %p97, %p98
    %p100 = scmp.ne.s32.totalorder %s92, %s95
    %p101 = scmp.eq.s32.totalorder %s30, 0
    %p102 = por %p100, %p101
    %p103 = scmp.ne.s32.totalorder %s92, %s95
    %p104 = scmp.eq.s32.totalorder %s35, 1
    %p105 = por %p103, %p104
    %p106 = scmp.ne.s32.totalorder %s95, %s96
    %p107 = scmp.eq.s32.totalorder %s35, 0
    %p108 = por %p106, %p107
    %p109 = scmp.ne.s32.totalorder %s95, %s96
    %p110 = scmp.eq.s32.totalorder %s36, 1
    %p111 = por %p109, %p110
    %p113 = scmp.ne.s32.totalorder %s96, %s112
    %p114 = scmp.eq.s32.totalorder %s36, 0
    %p115 = por %p113, %p114
    %s117 = sadd.s32 %s116, 1
    %p120 = scmp.eq.s32.totalorder %s30, 1
    %p121 = scmp.ne.s32.totalorder %s116, %s118
    %p122 = scmp.eq.s32.totalorder %s30, 0
    %p123 = por %p121, %p122
    %p124 = scmp.ne.s32.totalorder %s116, %s118
    %p125 = scmp.eq.s32.totalorder %s35, 1
    %p126 = por %p124, %p125
    %p127 = scmp.ne.s32.totalorder %s118, %s119
    %p128 = scmp.eq.s32.totalorder %s35, 0
    %p129 = por %p127, %p128
    %p130 = scmp.ne.s32.totalorder %s118, %s119
    %p131 = scmp.eq.s32.totalorder %s36, 1
    %p132 = por %p130, %p131
    %p134 = scmp.ne.s32.totalorder %s119, %s133
    %p135 = scmp.eq.s32.totalorder %s36, 0
    %p136 = por %p134, %p135
    %s138 = sadd.s32 %s137, 1
    %p141 = scmp.eq.s32.totalorder %s30, 1
    %p142 = scmp.ne.s32.totalorder %s137, %s139
    %p143 = scmp.eq.s32.totalorder %s30, 0
    %p144 = por %p142, %p143
    %p145 = scmp.ne.s32.totalorder %s137, %s139
    %p146 = scmp.eq.s32.totalorder %s35, 1
    %p147 = por %p145, %p146
    %p148 = scmp.ne.s32.totalorder %s139, %s140
    %p149 = scmp.eq.s32.totalorder %s35, 0
    %p150 = por %p148, %p149
    %p151 = scmp.ne.s32.totalorder %s139, %s140
    %p152 = scmp.eq.s32.totalorder %s36, 1
    %p153 = por %p151, %p152
    %p155 = scmp.ne.s32.totalorder %s140, %s154
    %p156 = scmp.eq.s32.totalorder %s36, 0
    %p157 = por %p155, %p156
    %s159 = sadd.s32 %s158, 1
    %p162 = scmp.eq.s32.totalorder %s30, 1
    %p163 = scmp.ne.s32.totalorder %s158, %s160
    %p164 = scmp.eq.s32.totalorder %s30, 0
    %p165 = por %p163, %p164
    %p166 = scmp.ne.s32.totalorder %s158, %s160
    %p167 = scmp.eq.s32.totalorder %s35, 1
    %p168 = por %p166, %p167
    %p169 = scmp.ne.s32.totalorder %s160, %s161
    %p170 = scmp.eq.s32.totalorder %s35, 0
    %p171 = por %p169, %p170
    %p172 = scmp.ne.s32.totalorder %s160, %s161
    %p173 = scmp.eq.s32.totalorder %s36, 1
    %p174 = por %p172, %p173
    %p176 = scmp.ne.s32.totalorder %s161, %s175
    %p177 = scmp.eq.s32.totalorder %s36, 0
    %p178 = por %p176, %p177
    %s180 = sadd.s32 %s179, 1
    %p183 = scmp.eq.s32.totalorder %s30, 1
    %p184 = scmp.ne.s32.totalorder %s179, %s181
    %p185 = scmp.eq.s32.totalorder %s30, 0
    %p186 = por %p184, %p185
    %p187 = scmp.ne.s32.totalorder %s179, %s181
    %p188 = scmp.eq.s32.totalorder %s35, 1
    %p189 = por %p187, %p188
    %p190 = scmp.ne.s32.totalorder %s181, %s182
    %p191 = scmp.eq.s32.totalorder %s35, 0
    %p192 = por %p190, %p191
    %p193 = scmp.ne.s32.totalorder %s181, %s182
    %p194 = scmp.eq.s32.totalorder %s36, 1
    %p195 = por %p193, %p194
    %p197 = scmp.ne.s32.totalorder %s182, %s196
    %p198 = scmp.eq.s32.totalorder %s36, 0
    %p199 = por %p197, %p198
    %s201 = sadd.s32 %s200, 1
    %p204 = scmp.eq.s32.totalorder %s30, 1
    %p205 = scmp.ne.s32.totalorder %s200, %s202
    %p206 = scmp.eq.s32.totalorder %s30, 0
    %p207 = por %p205, %p206
    %p208 = scmp.ne.s32.totalorder %s200, %s202
    %p209 = scmp.eq.s32.totalorder %s35, 1
    %p210 = por %p208, %p209
    %p211 = scmp.ne.s32.totalorder %s202, %s203
    %p212 = scmp.eq.s32.totalorder %s35, 0
    %p213 = por %p211, %p212
    %p214 = scmp.ne.s32.totalorder %s202, %s203
    %p215 = scmp.eq.s32.totalorder %s36, 1
    %p216 = por %p214, %p215
    %p218 = scmp.ne.s32.totalorder %s203, %s217
    %p219 = scmp.eq.s32.totalorder %s36, 0
    %p220 = por %p218, %p219
    %s222 = sadd.s32 %s221, 1
    %p225 = scmp.eq.s32.totalorder %s30, 1
    %p226 = scmp.ne.s32.totalorder %s221, %s223
    %p227 = scmp.eq.s32.totalorder %s30, 0
    %p228 = por %p226, %p227
    %p229 = scmp.ne.s32.totalorder %s221, %s223
    %p230 = scmp.eq.s32.totalorder %s35, 1
    %p231 = por %p229, %p230
    %p232 = scmp.ne.s32.totalorder %s223, %s224
    %p233 = scmp.eq.s32.totalorder %s35, 0
    %p234 = por %p232, %p233
    %p235 = scmp.ne.s32.totalorder %s223, %s224
    %p236 = scmp.eq.s32.totalorder %s36, 1
    %p237 = por %p235, %p236
    %p239 = scmp.ne.s32.totalorder %s224, %s238
    %p240 = scmp.eq.s32.totalorder %s36, 0
    %p241 = por %p239, %p240
    %s243 = sadd.s32 %s242, 1
    %p246 = scmp.eq.s32.totalorder %s30, 1
    %p247 = scmp.ne.s32.totalorder %s242, %s244
    %p248 = scmp.eq.s32.totalorder %s30, 0
    %p249 = por %p247, %p248
    %p250 = scmp.ne.s32.totalorder %s242, %s244
    %p251 = scmp.eq.s32.totalorder %s35, 1
    %p252 = por %p250, %p251
    %p253 = scmp.ne.s32.totalorder %s244, %s245
    %p254 = scmp.eq.s32.totalorder %s35, 0
    %p255 = por %p253, %p254
    %p256 = scmp.ne.s32.totalorder %s244, %s245
    %p257 = scmp.eq.s32.totalorder %s36, 1
    %p258 = por %p256, %p257
    %p260 = scmp.ne.s32.totalorder %s245, %s259
    %p261 = scmp.eq.s32.totalorder %s36, 0
    %p262 = por %p260, %p261
    %s264 = sadd.s32 %s263, 1
    %p267 = scmp.eq.s32.totalorder %s30, 1
    %p268 = scmp.ne.s32.totalorder %s263, %s265
    %p269 = scmp.eq.s32.totalorder %s30, 0
    %p270 = por %p268, %p269
    %p271 = scmp.ne.s32.totalorder %s263, %s265
    %p272 = scmp.eq.s32.totalorder %s35, 1
    %p273 = por %p271, %p272
    %p274 = scmp.ne.s32.totalorder %s265, %s266
    %p275 = scmp.eq.s32.totalorder %s35, 0
    %p276 = por %p274, %p275
    %p277 = scmp.ne.s32.totalorder %s265, %s266
    %p278 = scmp.eq.s32.totalorder %s36, 1
    %p279 = por %p277, %p278
    %p281 = scmp.ne.s32.totalorder %s266, %s280
    %p282 = scmp.eq.s32.totalorder %s36, 0
    %p283 = por %p281, %p282
    %s285 = sadd.s32 %s284, 1
    %p288 = scmp.eq.s32.totalorder %s30, 1
    %p289 = scmp.ne.s32.totalorder %s284, %s286
    %p290 = scmp.eq.s32.totalorder %s30, 0
    %p291 = por %p289, %p290
    %p292 = scmp.ne.s32.totalorder %s284, %s286
    %p293 = scmp.eq.s32.totalorder %s35, 1
    %p294 = por %p292, %p293
    %p295 = scmp.ne.s32.totalorder %s286, %s287
    %p296 = scmp.eq.s32.totalorder %s35, 0
    %p297 = por %p295, %p296
    %p298 = scmp.ne.s32.totalorder %s286, %s287
    %p299 = scmp.eq.s32.totalorder %s36, 1
    %p300 = por %p298, %p299
    %p302 = scmp.ne.s32.totalorder %s287, %s301
    %p303 = scmp.eq.s32.totalorder %s36, 0
    %p304 = por %p302, %p303
    %s306 = sadd.s32 %s305, 1
    %p309 = scmp.eq.s32.totalorder %s30, 1
    %p310 = scmp.ne.s32.totalorder %s305, %s307
    %p311 = scmp.eq.s32.totalorder %s30, 0
    %p312 = por %p310, %p311
    %p313 = scmp.ne.s32.totalorder %s305, %s307
    %p314 = scmp.eq.s32.totalorder %s35, 1
    %p315 = por %p313, %p314
    %p316 = scmp.ne.s32.totalorder %s307, %s308
    %p317 = scmp.eq.s32.totalorder %s35, 0
    %p318 = por %p316, %p317
    %p319 = scmp.ne.s32.totalorder %s307, %s308
    %p320 = scmp.eq.s32.totalorder %s36, 1
    %p321 = por %p319, %p320
    %p323 = scmp.ne.s32.totalorder %s308, %s322
    %p324 = scmp.eq.s32.totalorder %s36, 0
    %p325 = por %p323, %p324
    %s327 = sadd.s32 %s326, 1
    %p330 = scmp.eq.s32.totalorder %s30, 1
    %p331 = scmp.ne.s32.totalorder %s326, %s328
    %p332 = scmp.eq.s32.totalorder %s30, 0
    %p333 = por %p331, %p332
    %p334 = scmp.ne.s32.totalorder %s326, %s328
    %p335 = scmp.eq.s32.totalorder %s35, 1
    %p336 = por %p334, %p335
    %p337 = scmp.ne.s32.totalorder %s328, %s329
    %p338 = scmp.eq.s32.totalorder %s35, 0
    %p339 = por %p337, %p338
    %p340 = scmp.ne.s32.totalorder %s328, %s329
    %p341 = scmp.eq.s32.totalorder %s36, 1
    %p342 = por %p340, %p341
    %p344 = scmp.ne.s32.totalorder %s329, %s343
    %p345 = scmp.eq.s32.totalorder %s36, 0
    %p346 = por %p344, %p345
    %s348 = sadd.s32 %s347, 1
    %p351 = scmp.eq.s32.totalorder %s30, 1
    %p352 = scmp.ne.s32.totalorder %s347, %s349
    %p353 = scmp.eq.s32.totalorder %s30, 0
    %p354 = por %p352, %p353
    %p355 = scmp.ne.s32.totalorder %s347, %s349
    %p356 = scmp.eq.s32.totalorder %s35, 1
    %p357 = por %p355, %p356
    %p358 = scmp.ne.s32.totalorder %s349, %s350
    %p359 = scmp.eq.s32.totalorder %s35, 0
    %p360 = por %p358, %p359
    %p361 = scmp.ne.s32.totalorder %s349, %s350
    %p362 = scmp.eq.s32.totalorder %s36, 1
    %p363 = por %p361, %p362
    %p365 = scmp.ne.s32.totalorder %s350, %s364
    %p366 = scmp.eq.s32.totalorder %s36, 0
    %p367 = por %p365, %p366
    %s369 = sadd.s32 %s368, 1
    %p372 = scmp.eq.s32.totalorder %s30, 1
    %p373 = scmp.ne.s32.totalorder %s368, %s370
    %p374 = scmp.eq.s32.totalorder %s30, 0
    %p375 = por %p373, %p374
    %p376 = scmp.ne.s32.totalorder %s368, %s370
    %p377 = scmp.eq.s32.totalorder %s35, 1
    %p378 = por %p376, %p377
    %p379 = scmp.ne.s32.totalorder %s370, %s371
    %p380 = scmp.eq.s32.totalorder %s35, 0
    %p381 = por %p379, %p380
    %p382 = scmp.ne.s32.totalorder %s370, %s371
    %p383 = scmp.eq.s32.totalorder %s36, 1
    %p384 = por %p382, %p383
    %p386 = scmp.ne.s32.totalorder %s371, %s385
    %p387 = scmp.eq.s32.totalorder %s36, 0
    %p388 = por %p386, %p387
    %s390 = sadd.s32 %s389, 1
    %p393 = scmp.eq.s32.totalorder %s30, 1
    %p394 = scmp.ne.s32.totalorder %s389, %s391
    %p395 = scmp.eq.s32.totalorder %s30, 0
    %p396 = por %p394, %p395
    %p397 = scmp.ne.s32.totalorder %s389, %s391
    %p398 = scmp.eq.s32.totalorder %s35, 1
    %p399 = por %p397, %p398
    %p400 = scmp.ne.s32.totalorder %s391, %s392
    %p401 = scmp.eq.s32.totalorder %s35, 0
    %p402 = por %p400, %p401
    %p403 = scmp.ne.s32.totalorder %s391, %s392
    %p404 = scmp.eq.s32.totalorder %s36, 1
    %p405 = por %p403, %p404
    %p407 = scmp.ne.s32.totalorder %s392, %s406
    %p408 = scmp.eq.s32.totalorder %s36, 0
    %p409 = por %p407, %p408
    %s411 = sadd.s32 %s410, 1
    %p414 = scmp.eq.s32.totalorder %s30, 1
    %p415 = scmp.ne.s32.totalorder %s410, %s412
    %p416 = scmp.eq.s32.totalorder %s30, 0
    %p417 = por %p415, %p416
    %p418 = scmp.ne.s32.totalorder %s410, %s412
    %p419 = scmp.eq.s32.totalorder %s35, 1
    %p420 = por %p418, %p419
    %p421 = scmp.ne.s32.totalorder %s412, %s413
    %p422 = scmp.eq.s32.totalorder %s35, 0
    %p423 = por %p421, %p422
    %p424 = scmp.ne.s32.totalorder %s412, %s413
    %p425 = scmp.eq.s32.totalorder %s36, 1
    %p426 = por %p424, %p425
    %p428 = scmp.ne.s32.totalorder %s413, %s427
    %p429 = scmp.eq.s32.totalorder %s36, 0
    %p430 = por %p428, %p429
    %s432 = sadd.s32 %s431, 1
    %p435 = scmp.eq.s32.totalorder %s30, 1
    %p436 = scmp.ne.s32.totalorder %s431, %s433
    %p437 = scmp.eq.s32.totalorder %s30, 0
    %p438 = por %p436, %p437
    %p439 = scmp.ne.s32.totalorder %s431, %s433
    %p440 = scmp.eq.s32.totalorder %s35, 1
    %p441 = por %p439, %p440
    %p442 = scmp.ne.s32.totalorder %s433, %s434
    %p443 = scmp.eq.s32.totalorder %s35, 0
    %p444 = por %p442, %p443
    %p445 = scmp.ne.s32.totalorder %s433, %s434
    %p446 = scmp.eq.s32.totalorder %s36, 1
    %p447 = por %p445, %p446
    %p449 = scmp.ne.s32.totalorder %s434, %s448
    %p450 = scmp.eq.s32.totalorder %s36, 0
    %p451 = por %p449, %p450
    %s453 = sadd.s32 %s452, 1
    %p456 = scmp.eq.s32.totalorder %s30, 1
    %p457 = scmp.ne.s32.totalorder %s452, %s454
    %p458 = scmp.eq.s32.totalorder %s30, 0
    %p459 = por %p457, %p458
    %p460 = scmp.ne.s32.totalorder %s452, %s454
    %p461 = scmp.eq.s32.totalorder %s35, 1
    %p462 = por %p460, %p461
    %p463 = scmp.ne.s32.totalorder %s454, %s455
    %p464 = scmp.eq.s32.totalorder %s35, 0
    %p465 = por %p463, %p464
    %p466 = scmp.ne.s32.totalorder %s454, %s455
    %p467 = scmp.eq.s32.totalorder %s36, 1
    %p468 = por %p466, %p467
    %p470 = scmp.ne.s32.totalorder %s455, %s469
    %p471 = scmp.eq.s32.totalorder %s36, 0
    %p472 = por %p470, %p471
    %s474 = sadd.s32 %s473, 1
    %p477 = scmp.eq.s32.totalorder %s30, 1
    %p478 = scmp.ne.s32.totalorder %s473, %s475
    %p479 = scmp.eq.s32.totalorder %s30, 0
    %p480 = por %p478, %p479
    %p481 = scmp.ne.s32.totalorder %s473, %s475
    %p482 = scmp.eq.s32.totalorder %s35, 1
    %p483 = por %p481, %p482
    %p484 = scmp.ne.s32.totalorder %s475, %s476
    %p485 = scmp.eq.s32.totalorder %s35, 0
    %p486 = por %p484, %p485
    %p487 = scmp.ne.s32.totalorder %s475, %s476
    %p488 = scmp.eq.s32.totalorder %s36, 1
    %p489 = por %p487, %p488
    %p491 = scmp.ne.s32.totalorder %s476, %s490
    %p492 = scmp.eq.s32.totalorder %s36, 0
    %p493 = por %p491, %p492
    %s495 = sadd.s32 %s494, 1
    %p498 = scmp.eq.s32.totalorder %s30, 1
    %p499 = scmp.ne.s32.totalorder %s494, %s496
    %p500 = scmp.eq.s32.totalorder %s30, 0
    %p501 = por %p499, %p500
    %p502 = scmp.ne.s32.totalorder %s494, %s496
    %p503 = scmp.eq.s32.totalorder %s35, 1
    %p504 = por %p502, %p503
    %p505 = scmp.ne.s32.totalorder %s496, %s497
    %p506 = scmp.eq.s32.totalorder %s35, 0
    %p507 = por %p505, %p506
    %p508 = scmp.ne.s32.totalorder %s496, %s497
    %p509 = scmp.eq.s32.totalorder %s36, 1
    %p510 = por %p508, %p509
    %p512 = scmp.ne.s32.totalorder %s497, %s511
    %p513 = scmp.eq.s32.totalorder %s36, 0
    %p514 = por %p512, %p513
    %s516 = sadd.s32 %s515, 1
    %p519 = scmp.eq.s32.totalorder %s30, 1
    %p520 = scmp.ne.s32.totalorder %s515, %s517
    %p521 = scmp.eq.s32.totalorder %s30, 0
    %p522 = por %p520, %p521
    %p523 = scmp.ne.s32.totalorder %s515, %s517
    %p524 = scmp.eq.s32.totalorder %s35, 1
    %p525 = por %p523, %p524
    %p526 = scmp.ne.s32.totalorder %s517, %s518
    %p527 = scmp.eq.s32.totalorder %s35, 0
    %p528 = por %p526, %p527
    %p529 = scmp.ne.s32.totalorder %s517, %s518
    %p530 = scmp.eq.s32.totalorder %s36, 1
    %p531 = por %p529, %p530
    %p533 = scmp.ne.s32.totalorder %s518, %s532
    %p534 = scmp.eq.s32.totalorder %s36, 0
    %p535 = por %p533, %p534
    %s537 = sadd.s32 %s536, 1
    %p540 = scmp.eq.s32.totalorder %s30, 1
    %p541 = scmp.ne.s32.totalorder %s536, %s538
    %p542 = scmp.eq.s32.totalorder %s30, 0
    %p543 = por %p541, %p542
    %p544 = scmp.ne.s32.totalorder %s536, %s538
    %p545 = scmp.eq.s32.totalorder %s35, 1
    %p546 = por %p544, %p545
    %p547 = scmp.ne.s32.totalorder %s538, %s539
    %p548 = scmp.eq.s32.totalorder %s35, 0
    %p549 = por %p547, %p548
    %p550 = scmp.ne.s32.totalorder %s538, %s539
    %p551 = scmp.eq.s32.totalorder %s36, 1
    %p552 = por %p550, %p551
    %p554 = scmp.ne.s32.totalorder %s539, %s553
    %p555 = scmp.eq.s32.totalorder %s36, 0
    %p556 = por %p554, %p555
    %s557 = ssub.s32 %s30, %s37
    %p558 = scmp.eq.s32.totalorder %s557, 0
    %s560 = sadd.s32 %s559, 1
    %s561 = scalar_select %p558, %s559, %s560
    %p564 = pneg %p558
    %p565 = scmp.eq.s32.totalorder %s30, 1
    %p566 = por %p564, %p565
    %p567 = scmp.ne.s32.totalorder %s559, %s562
    %p568 = scmp.eq.s32.totalorder %s30, 0
    %p569 = por %p567, %p568
    %p570 = scmp.ne.s32.totalorder %s559, %s562
    %p571 = scmp.eq.s32.totalorder %s35, 1
    %p572 = por %p570, %p571
    %p573 = scmp.ne.s32.totalorder %s562, %s563
    %p574 = scmp.eq.s32.totalorder %s35, 0
    %p575 = por %p573, %p574
    %p576 = scmp.ne.s32.totalorder %s562, %s563
    %p577 = scmp.eq.s32.totalorder %s36, 1
    %p578 = por %p576, %p577
    %p580 = scmp.ne.s32.totalorder %s563, %s579
    %p581 = scmp.eq.s32.totalorder %s36, 0
    %p582 = por %p580, %p581
    %p583 = scmp.le.s32.totalorder 1, %s30
    %p584 = scmp.lt.s32.totalorder %s30, 3
    %p585 = pnand %p583, %p584
    %p586 = pneg %p585
    // Predicated region
    $region9: #{tpu_custom_call.1} parent=5 // pred_check
      _
    $region10: #{tpu_custom_call.1} parent=5 // pred_check_branch
      %588 = sbr.rel (%p585) target = $region12
    $region11: #{tpu_custom_call.1} parent=5 // pred_region
      %s589 = ssub.s32 %s30, 1
      // Predicated region
      $region13: #{tpu_custom_call.1} parent=11 // pred_check
        %p590 = pneg %p129
      $region14: #{tpu_custom_call.1} parent=11 // pred_check_branch
        %592 = sbr.rel (%p590) target = $region16
      $region15: #{tpu_custom_call.1} parent=11 // pred_region
        _
      $region16: #{tpu_custom_call.1} parent=11 // pred_fallthru
        _
      // Predicated region
      $region17: #{tpu_custom_call.1} parent=11 // pred_check
        %p593 = pneg %p150
      $region18: #{tpu_custom_call.1} parent=11 // pred_check_branch
        %595 = sbr.rel (%p593) target = $region20
      $region19: #{tpu_custom_call.1} parent=11 // pred_region
        _
      $region20: #{tpu_custom_call.1} parent=11 // pred_fallthru
        _
      // Predicated region
      $region21: #{tpu_custom_call.1} parent=11 // pred_check
        %p596 = pneg %p171
      $region22: #{tpu_custom_call.1} parent=11 // pred_check_branch
        %598 = sbr.rel (%p596) target = $region24
      $region23: #{tpu_custom_call.1} parent=11 // pred_region
        _
      $region24: #{tpu_custom_call.1} parent=11 // pred_fallthru
        _
      // Predicated region
      $region25: #{tpu_custom_call.1} parent=11 // pred_check
        %p599 = pneg %p192
      $region26: #{tpu_custom_call.1} parent=11 // pred_check_branch
        %601 = sbr.rel (%p599) target = $region28
      $region27: #{tpu_custom_call.1} parent=11 // pred_region
        _
      $region28: #{tpu_custom_call.1} parent=11 // pred_fallthru
        _
      // Predicated region
      $region29: #{tpu_custom_call.1} parent=11 // pred_check
        %p602 = pneg %p213
      $region30: #{tpu_custom_call.1} parent=11 // pred_check_branch
        %604 = sbr.rel (%p602) target = $region32
      $region31: #{tpu_custom_call.1} parent=11 // pred_region
        _
      $region32: #{tpu_custom_call.1} parent=11 // pred_fallthru
        _
      // Predicated region
      $region33: #{tpu_custom_call.1} parent=11 // pred_check
        %p605 = pneg %p234
      $region34: #{tpu_custom_call.1} parent=11 // pred_check_branch
        %607 = sbr.rel (%p605) target = $region36
      $region35: #{tpu_custom_call.1} parent=11 // pred_region
        _
      $region36: #{tpu_custom_call.1} parent=11 // pred_fallthru
        _
      // Predicated region
      $region37: #{tpu_custom_call.1} parent=11 // pred_check
        %p608 = pneg %p255
      $region38: #{tpu_custom_call.1} parent=11 // pred_check_branch
        %610 = sbr.rel (%p608) target = $region40
      $region39: #{tpu_custom_call.1} parent=11 // pred_region
        _
      $region40: #{tpu_custom_call.1} parent=11 // pred_fallthru
        _
      // Predicated region
      $region41: #{tpu_custom_call.1} parent=11 // pred_check
        %p611 = pneg %p276
      $region42: #{tpu_custom_call.1} parent=11 // pred_check_branch
        %613 = sbr.rel (%p611) target = $region44
      $region43: #{tpu_custom_call.1} parent=11 // pred_region
        _
      $region44: #{tpu_custom_call.1} parent=11 // pred_fallthru
        _
      // Predicated region
      $region45: #{tpu_custom_call.1} parent=11 // pred_check
        %p614 = pneg %p297
      $region46: #{tpu_custom_call.1} parent=11 // pred_check_branch
        %616 = sbr.rel (%p614) target = $region48
      $region47: #{tpu_custom_call.1} parent=11 // pred_region
        _
      $region48: #{tpu_custom_call.1} parent=11 // pred_fallthru
        _
      // Predicated region
      $region49: #{tpu_custom_call.1} parent=11 // pred_check
        %p617 = pneg %p318
      $region50: #{tpu_custom_call.1} parent=11 // pred_check_branch
        %619 = sbr.rel (%p617) target = $region52
      $region51: #{tpu_custom_call.1} parent=11 // pred_region
        _
      $region52: #{tpu_custom_call.1} parent=11 // pred_fallthru
        _
      // Predicated region
      $region53: #{tpu_custom_call.1} parent=11 // pred_check
        %p620 = pneg %p339
      $region54: #{tpu_custom_call.1} parent=11 // pred_check_branch
        %622 = sbr.rel (%p620) target = $region56
      $region55: #{tpu_custom_call.1} parent=11 // pred_region
        _
      $region56: #{tpu_custom_call.1} parent=11 // pred_fallthru
        _
      // Predicated region
      $region57: #{tpu_custom_call.1} parent=11 // pred_check
        %p623 = pneg %p360
      $region58: #{tpu_custom_call.1} parent=11 // pred_check_branch
        %625 = sbr.rel (%p623) target = $region60
      $region59: #{tpu_custom_call.1} parent=11 // pred_region
        _
      $region60: #{tpu_custom_call.1} parent=11 // pred_fallthru
        _
      // Predicated region
      $region61: #{tpu_custom_call.1} parent=11 // pred_check
        %p626 = pneg %p381
      $region62: #{tpu_custom_call.1} parent=11 // pred_check_branch
        %628 = sbr.rel (%p626) target = $region64
      $region63: #{tpu_custom_call.1} parent=11 // pred_region
        _
      $region64: #{tpu_custom_call.1} parent=11 // pred_fallthru
        _
      // Predicated region
      $region65: #{tpu_custom_call.1} parent=11 // pred_check
        %p629 = pneg %p402
      $region66: #{tpu_custom_call.1} parent=11 // pred_check_branch
        %631 = sbr.rel (%p629) target = $region68
      $region67: #{tpu_custom_call.1} parent=11 // pred_region
        _
      $region68: #{tpu_custom_call.1} parent=11 // pred_fallthru
        _
      // Predicated region
      $region69: #{tpu_custom_call.1} parent=11 // pred_check
        %p632 = pneg %p423
      $region70: #{tpu_custom_call.1} parent=11 // pred_check_branch
        %634 = sbr.rel (%p632) target = $region72
      $region71: #{tpu_custom_call.1} parent=11 // pred_region
        _
      $region72: #{tpu_custom_call.1} parent=11 // pred_fallthru
        _
      // Predicated region
      $region73: #{tpu_custom_call.1} parent=11 // pred_check
        %p635 = pneg %p444
      $region74: #{tpu_custom_call.1} parent=11 // pred_check_branch
        %637 = sbr.rel (%p635) target = $region76
      $region75: #{tpu_custom_call.1} parent=11 // pred_region
        _
      $region76: #{tpu_custom_call.1} parent=11 // pred_fallthru
        _
      // Predicated region
      $region77: #{tpu_custom_call.1} parent=11 // pred_check
        %p638 = pneg %p465
      $region78: #{tpu_custom_call.1} parent=11 // pred_check_branch
        %640 = sbr.rel (%p638) target = $region80
      $region79: #{tpu_custom_call.1} parent=11 // pred_region
        _
      $region80: #{tpu_custom_call.1} parent=11 // pred_fallthru
        _
      // Predicated region
      $region81: #{tpu_custom_call.1} parent=11 // pred_check
        %p641 = pneg %p486
      $region82: #{tpu_custom_call.1} parent=11 // pred_check_branch
        %643 = sbr.rel (%p641) target = $region84
      $region83: #{tpu_custom_call.1} parent=11 // pred_region
        _
      $region84: #{tpu_custom_call.1} parent=11 // pred_fallthru
        _
      // Predicated region
      $region85: #{tpu_custom_call.1} parent=11 // pred_check
        %p644 = pneg %p507
      $region86: #{tpu_custom_call.1} parent=11 // pred_check_branch
        %646 = sbr.rel (%p644) target = $region88
      $region87: #{tpu_custom_call.1} parent=11 // pred_region
        _
      $region88: #{tpu_custom_call.1} parent=11 // pred_fallthru
        _
      // Predicated region
      $region89: #{tpu_custom_call.1} parent=11 // pred_check
        %p647 = pneg %p528
      $region90: #{tpu_custom_call.1} parent=11 // pred_check_branch
        %649 = sbr.rel (%p647) target = $region92
      $region91: #{tpu_custom_call.1} parent=11 // pred_region
        _
      $region92: #{tpu_custom_call.1} parent=11 // pred_fallthru
        _
      // Predicated region
      $region93: #{tpu_custom_call.1} parent=11 // pred_check
        %p650 = pneg %p549
      $region94: #{tpu_custom_call.1} parent=11 // pred_check_branch
        %652 = sbr.rel (%p650) target = $region96
      $region95: #{tpu_custom_call.1} parent=11 // pred_region
        _
      $region96: #{tpu_custom_call.1} parent=11 // pred_fallthru
        _
    $region12: #{tpu_custom_call.1} parent=5 // pred_fallthru
      _
    %p653 = scmp.lt.s32.totalorder %s30, 2
    // Predicated region
    $region97: #{tpu_custom_call.1} parent=5 // pred_check
      %p654 = pneg %p653
    $region98: #{tpu_custom_call.1} parent=5 // pred_check_branch
      %656 = sbr.rel (%p654) target = $region100
    $region99: #{tpu_custom_call.1} parent=5 // pred_region
      // Predicated region
      $region101: #{tpu_custom_call.1} parent=99 // pred_check
        %p657 = pneg %p50
      $region102: #{tpu_custom_call.1} parent=99 // pred_check_branch
        %659 = sbr.rel (%p657) target = $region104
      $region103: #{tpu_custom_call.1} parent=99 // pred_region
        %p660 = scmp.lt.s32.totalorder %s30, 1
        %s661 = scalar_select %p660, %s30, 1
        %s662 = smul.addr %s661, 8
        %s663 = scalar_lea.vmem %s0, %s662
      $region104: #{tpu_custom_call.1} parent=99 // pred_fallthru
        _
      // Predicated region
      $region105: #{tpu_custom_call.1} parent=99 // pred_check
        %p664 = pneg %p76
      $region106: #{tpu_custom_call.1} parent=99 // pred_check_branch
        %666 = sbr.rel (%p664) target = $region108
      $region107: #{tpu_custom_call.1} parent=99 // pred_region
        %p667 = scmp.lt.s32.totalorder %s30, 1
        %s668 = scalar_select %p667, %s30, 1
        %s669 = smul.addr %s668, 4
        %s670 = scalar_lea.vmem %s1, %s669
      $region108: #{tpu_custom_call.1} parent=99 // pred_fallthru
        _
      // Predicated region
      $region109: #{tpu_custom_call.1} parent=99 // pred_check
        %p671 = pneg %p102
      $region110: #{tpu_custom_call.1} parent=99 // pred_check_branch
        %673 = sbr.rel (%p671) target = $region112
      $region111: #{tpu_custom_call.1} parent=99 // pred_region
        %p674 = scmp.lt.s32.totalorder %s30, 1
        %s675 = scalar_select %p674, %s30, 1
        %s676 = smul.addr %s675, 8
        %s677 = scalar_lea.vmem %s2, %s676
      $region112: #{tpu_custom_call.1} parent=99 // pred_fallthru
        _
    $region100: #{tpu_custom_call.1} parent=5 // pred_fallthru
      _
    %p678 = scmp.le.s32.totalorder 1, %s30
    %p679 = scmp.lt.s32.totalorder %s30, 3
    %p680 = pnand %p678, %p679
    %p681 = pneg %p680
    // Predicated region
    $region113: #{tpu_custom_call.1} parent=5 // pred_check
      _
    $region114: #{tpu_custom_call.1} parent=5 // pred_check_branch
      %683 = sbr.rel (%p680) target = $region116
    $region115: #{tpu_custom_call.1} parent=5 // pred_region
      %s684 = ssub.s32 %s30, 1
      %p685 = scmp.lt.s32.totalorder %s35, 1
      %s686 = scalar_select %p685, %s35, 1
      %s687 = smul.addr %s686, 8
      %s688 = scalar_lea.vmem %s0, %s687
      %p689 = pneg %p56
      %p690 = pneg %p53
      %p691 = scmp.lt.s32.totalorder %s35, 1
      %s692 = scalar_select %p691, %s35, 1
      %s693 = smul.addr %s692, 4
      %s694 = scalar_lea.vmem %s1, %s693
      %p695 = pneg %p82
      %p696 = pneg %p79
      %p697 = scmp.lt.s32.totalorder %s35, 1
      %s698 = scalar_select %p697, %s35, 1
      %s699 = smul.addr %s698, 8
      %s700 = scalar_lea.vmem %s2, %s699
      %p701 = pneg %p108
      %p702 = pneg %p105
      %p703 = pneg %p129
      %p704 = pneg %p126
      %p705 = pneg %p150
      %p706 = pneg %p147
      %p707 = pneg %p171
      %p708 = pneg %p168
      %p709 = pneg %p192
      %p710 = pneg %p189
      %p711 = pneg %p213
      %p712 = pneg %p210
      %p713 = pneg %p234
      %p714 = pneg %p231
      %p715 = pneg %p255
      %p716 = pneg %p252
      %p717 = pneg %p276
      %p718 = pneg %p273
      %p719 = pneg %p297
      %p720 = pneg %p294
      %p721 = pneg %p318
      %p722 = pneg %p315
      %p723 = pneg %p339
      %p724 = pneg %p336
      %p725 = pneg %p360
      %p726 = pneg %p357
      %p727 = pneg %p381
      %p728 = pneg %p378
      %p729 = pneg %p402
      %p730 = pneg %p399
      %p731 = pneg %p423
      %p732 = pneg %p420
      %p733 = pneg %p444
      %p734 = pneg %p441
      %p735 = pneg %p465
      %p736 = pneg %p462
      %p737 = pneg %p486
      %p738 = pneg %p483
      %p739 = pneg %p507
      %p740 = pneg %p504
      %p741 = pneg %p528
      %p742 = pneg %p525
      %p743 = pneg %p549
      %p744 = pneg %p546
      %p745 = pneg %p575
      %p746 = pneg %p572
      %p747 = scmp.lt.s32.totalorder %s35, 1
      %s748 = scalar_select %p747, %s35, 1
      %s749 = smul.addr %s748, 8
      %s750 = scalar_lea.vmem %s24, %s749
      %p751 = scmp.lt.s32.totalorder %s35, 1
      %s752 = scalar_select %p751, %s35, 1
      %s753 = smul.addr %s752, 8
      %s754 = scalar_lea.vmem %s0, %s753
      %p755 = scmp.lt.s32.totalorder %s35, 1
      %s756 = scalar_select %p755, %s35, 1
      %s757 = smul.addr %s756, 4
      %s758 = scalar_lea.vmem %s1, %s757
      %p759 = scmp.lt.s32.totalorder %s35, 1
      %s760 = scalar_select %p759, %s35, 1
      %s761 = smul.addr %s760, 8
      %s762 = scalar_lea.vmem %s2, %s761
      %p763 = scmp.lt.s32.totalorder %s35, 1
      %s764 = scalar_select %p763, %s35, 1
      %s765 = smul.addr %s764, 8
      %s766 = scalar_lea.vmem %s24, %s765
      %v768 = vld [vmem:[%s754] sm:$0xff]
      %v769 = vld [vmem:[%s758] sm:$0x7]
      %v770 = vlaneseq
      %v771 = vshrl.u32 %v770, 7
      %v772 = vsub.s32 0, %v771
      %v773 = vrot.slane %v769, %v772
      %775 = vset.pattern.permute.xlu0 0
      %776 = vperm.xlu0 %775, %v768
      %v777 = vpop.permute.xlu0 %776
      %v779 = vsub.f32 %v773, %v777
      %v780 = vlaneseq
      %v781 = vshrl.u32 %v780, 7
      %v782 = vsub.s32 1, %v781
      %v783 = vrot.slane %v769, %v782
      %784 = vset.pattern.permute.xlu0 1
      %785 = vperm.xlu0 %784, %v768
      %v786 = vpop.permute.xlu0 %785
      %v788 = vsub.f32 %v783, %v786
      %v789 = vlaneseq
      %v790 = vshrl.u32 %v789, 7
      %v791 = vsub.s32 2, %v790
      %v792 = vrot.slane %v769, %v791
      %793 = vset.pattern.permute.xlu0 2
      %794 = vperm.xlu0 %793, %v768
      %v795 = vpop.permute.xlu0 %794
      %v797 = vsub.f32 %v792, %v795
      %v798 = vmul.f32 %v779, %v779
      %v799 = vmul.f32 %v788, %v788
      %v800 = vadd.f32 %v798, %v799
      %v801 = vmul.f32 %v797, %v797
      %v802 = vadd.f32 %v800, %v801
      %v803 = vrsqrt.pop %v802
      %v804 = vmul.f32 %v802, %v803
      %vm805 = vcmp.eq.f32.partialorder %v802, inf
      %v806 = vsel %vm805, %v802, %v804
      %vm807 = vcmp.eq.f32.partialorder %v802, 0.0
      %v808 = vand.u32 %v802, 2147483648
      %v809 = vsel %vm807, %v808, %v806
      %v810 = vlaneseq
      %v811 = vshrl.u32 %v810, 7
      %v812 = vlaneseq
      %v813 = vand.u32 %v812, 127
      %vm814 = vcmp.eq.s32.totalorder %v811, %v813
      %v815 = vld [vmem:[%s762] sm:$0xff]
      %v816 = vmul.f32 %v815, %v815
      %818 = vrot.lane.b32.xlu0 %v816, 124
      %v819 = vpop.permute.xlu0 %818
      %v821 = vadd.f32 %v816, %v819
      %822 = vrot.lane.b32.xlu0 %v816, 120
      %v823 = vpop.permute.xlu0 %822
      %v825 = vadd.f32 %v821, %v823
      %v826 = vadd.f32 %v825, 1e-06
      %v827 = vrsqrt.pop %v826
      %v828 = vmul.f32 %v826, %v827
      %vm829 = vcmp.eq.f32.partialorder %v826, inf
      %v830 = vsel %vm829, %v826, %v828
      %vm831 = vcmp.eq.f32.partialorder %v826, 0.0
      %v832 = vand.u32 %v826, 2147483648
      %v833 = vsel %vm831, %v832, %v830
      %v834 = vpack.c.bf16 %v833, %v833
      %v835 = vld [vmem:[%s3] sm:$0x3]
      %vm836 = vcmask 31744
      %v838 = vsel %vm836, %v834, 0
      %vm840 = vcmask 1041408
      %v842 = vsel %vm840, %v835, 0
      %844 = vmatprep.subr.bf16.mxu0 0
      %845 = vmatpush1.bf16.msra.mxu0 0
      %846 = vmatprep.subr.bf16.mxu0 0
      %847 = vmatpush1.bf16.msra.mxu0 0
      %848 = vmatprep.subr.bf16.mxu0 0
      %849 = vmatpush1.bf16.msra.mxu0 0
      %850 = vmatprep.subr.bf16.mxu0 0
      %851 = vmatpush1.bf16.msra.mxu0 0
      %852 = vmatprep.subr.bf16.mxu0 0
      %853 = vmatpush1.bf16.msra.mxu0 0
      %854 = vmatprep.subr.bf16.mxu0 0
      %855 = vmatpush1.bf16.msra.mxu0 0
      %856 = vmatprep.subr.bf16.mxu0 0
      %857 = vmatpush1.bf16.msra.mxu0 0
      %858 = vmatprep.subr.bf16.mxu0 0
      %859 = vmatpush1.bf16.msra.mxu0 %v842
      %860 = vmatprep.subr.bf16.mxu0 0
      %861 = vmatpush2.bf16.msra.mxu0 0
      %862 = vmatprep.subr.bf16.mxu0 0
      %863 = vmatpush2.bf16.msra.mxu0 0
      %864 = vmatprep.subr.bf16.mxu0 0
      %865 = vmatpush2.bf16.msra.mxu0 0
      %866 = vmatprep.subr.bf16.mxu0 0
      %867 = vmatpush2.bf16.msra.mxu0 0
      %868 = vmatprep.subr.bf16.mxu0 0
      %869 = vmatpush2.bf16.msra.mxu0 0
      %870 = vmatprep.subr.bf16.mxu0 0
      %871 = vmatpush2.bf16.msra.mxu0 0
      %872 = vmatprep.subr.bf16.mxu0 0
      %873 = vmatpush2.bf16.msra.mxu0 0
      %874 = vmatprep.subr.bf16.mxu0 0
      %875 = vmatpush2.bf16.msra.mxu0 0
      %876 = vmatprep.mubr.bf16.mxu0 0
      %877 = vmatmul.mubr.bf16.gmra.mxu0 %v838
      %v878 = vpop.f32.mrf.mxu0
      %v879 = vadd.f32 0.0, %v878
      %v880 = vpop.f32.mrf.mxu0
      %v881 = vpop.f32.mrf.mxu0
      %v882 = vpop.f32.mrf.mxu0
      %883 = vdwg.mxu0
      %v884 = vld [vmem:[%s4] sm:$0x3]
      %v886 = vsel %vm840, %v884, 0
      %888 = vmatprep.subr.bf16.mxu0 0
      %889 = vmatpush1.bf16.msra.mxu0 0
      %890 = vmatprep.subr.bf16.mxu0 0
      %891 = vmatpush1.bf16.msra.mxu0 0
      %892 = vmatprep.subr.bf16.mxu0 0
      %893 = vmatpush1.bf16.msra.mxu0 0
      %894 = vmatprep.subr.bf16.mxu0 0
      %895 = vmatpush1.bf16.msra.mxu0 0
      %896 = vmatprep.subr.bf16.mxu0 0
      %897 = vmatpush1.bf16.msra.mxu0 0
      %898 = vmatprep.subr.bf16.mxu0 0
      %899 = vmatpush1.bf16.msra.mxu0 0
      %900 = vmatprep.subr.bf16.mxu0 0
      %901 = vmatpush1.bf16.msra.mxu0 0
      %902 = vmatprep.subr.bf16.mxu0 0
      %903 = vmatpush1.bf16.msra.mxu0 %v886
      %904 = vmatprep.subr.bf16.mxu0 0
      %905 = vmatpush2.bf16.msra.mxu0 0
      %906 = vmatprep.subr.bf16.mxu0 0
      %907 = vmatpush2.bf16.msra.mxu0 0
      %908 = vmatprep.subr.bf16.mxu0 0
      %909 = vmatpush2.bf16.msra.mxu0 0
      %910 = vmatprep.subr.bf16.mxu0 0
      %911 = vmatpush2.bf16.msra.mxu0 0
      %912 = vmatprep.subr.bf16.mxu0 0
      %913 = vmatpush2.bf16.msra.mxu0 0
      %914 = vmatprep.subr.bf16.mxu0 0
      %915 = vmatpush2.bf16.msra.mxu0 0
      %916 = vmatprep.subr.bf16.mxu0 0
      %917 = vmatpush2.bf16.msra.mxu0 0
      %918 = vmatprep.subr.bf16.mxu0 0
      %919 = vmatpush2.bf16.msra.mxu0 0
      %920 = vmatprep.mubr.bf16.mxu0 0
      %921 = vmatmul.mubr.bf16.gmra.mxu0 %v838
      %v922 = vpop.f32.mrf.mxu0
      %v923 = vadd.f32 0.0, %v922
      %v924 = vpop.f32.mrf.mxu0
      %v925 = vpop.f32.mrf.mxu0
      %v926 = vpop.f32.mrf.mxu0
      %927 = vdwg.mxu0
      %v928 = vpack.c.bf16 %v879, %v879
      %v929 = vpack.c.bf16 %v923, %v923
      %v930 = vld [vmem:[%s5] sm:$0x1]
      %vm931 = vcmask 15360
      %v933 = vsel %vm931, %v928, 0
      %vm935 = vcmask 1040384
      %v937 = vsel %vm935, %v930, 0
      %939 = vmatprep.subr.bf16.mxu0 0
      %940 = vmatpush1.bf16.msra.mxu0 0
      %941 = vmatprep.subr.bf16.mxu0 0
      %942 = vmatpush1.bf16.msra.mxu0 0
      %943 = vmatprep.subr.bf16.mxu0 0
      %944 = vmatpush1.bf16.msra.mxu0 0
      %945 = vmatprep.subr.bf16.mxu0 0
      %946 = vmatpush1.bf16.msra.mxu0 0
      %947 = vmatprep.subr.bf16.mxu0 0
      %948 = vmatpush1.bf16.msra.mxu0 0
      %949 = vmatprep.subr.bf16.mxu0 0
      %950 = vmatpush1.bf16.msra.mxu0 0
      %951 = vmatprep.subr.bf16.mxu0 0
      %952 = vmatpush1.bf16.msra.mxu0 0
      %953 = vmatprep.subr.bf16.mxu0 0
      %954 = vmatpush1.bf16.msra.mxu0 %v937
      %955 = vmatprep.subr.bf16.mxu0 0
      %956 = vmatpush2.bf16.msra.mxu0 0
      %957 = vmatprep.subr.bf16.mxu0 0
      %958 = vmatpush2.bf16.msra.mxu0 0
      %959 = vmatprep.subr.bf16.mxu0 0
      %960 = vmatpush2.bf16.msra.mxu0 0
      %961 = vmatprep.subr.bf16.mxu0 0
      %962 = vmatpush2.bf16.msra.mxu0 0
      %963 = vmatprep.subr.bf16.mxu0 0
      %964 = vmatpush2.bf16.msra.mxu0 0
      %965 = vmatprep.subr.bf16.mxu0 0
      %966 = vmatpush2.bf16.msra.mxu0 0
      %967 = vmatprep.subr.bf16.mxu0 0
      %968 = vmatpush2.bf16.msra.mxu0 0
      %969 = vmatprep.subr.bf16.mxu0 0
      %970 = vmatpush2.bf16.msra.mxu0 0
      %971 = vmatprep.mubr.bf16.mxu0 0
      %972 = vmatmul.mubr.bf16.gmra.mxu0 %v933
      %v973 = vpop.f32.mrf.mxu0
      %v974 = vadd.f32 0.0, %v973
      %v975 = vpop.f32.mrf.mxu0
      %v976 = vpop.f32.mrf.mxu0
      %v977 = vpop.f32.mrf.mxu0
      %978 = vdwg.mxu0
      %980 = vset.pattern.permute.xlu0 0
      %981 = vperm.xlu0 %980, %v974
      %v982 = vpop.permute.xlu0 %981
      %v984 = vmul.f32 %v809, %v982
      %v986 = vsel %vm931, %v929, 0
      %988 = vmatprep.subr.bf16.mxu0 0
      %989 = vmatpush1.bf16.xpose.msra.mxu0 0
      %990 = vmatprep.subr.bf16.mxu0 0
      %991 = vmatpush1.bf16.xpose.msra.mxu0 0
      %992 = vmatprep.subr.bf16.mxu0 0
      %993 = vmatpush1.bf16.xpose.msra.mxu0 0
      %994 = vmatprep.subr.bf16.mxu0 0
      %995 = vmatpush1.bf16.xpose.msra.mxu0 0
      %996 = vmatprep.subr.bf16.mxu0 0
      %997 = vmatpush1.bf16.xpose.msra.mxu0 0
      %998 = vmatprep.subr.bf16.mxu0 0
      %999 = vmatpush1.bf16.xpose.msra.mxu0 0
      %1000 = vmatprep.subr.bf16.mxu0 0
      %1001 = vmatpush1.bf16.xpose.msra.mxu0 0
      %1002 = vmatprep.subr.bf16.mxu0 0
      %1003 = vmatpush1.bf16.xpose.msra.mxu0 %v986
      %1004 = vmatprep.subr.bf16.mxu0 0
      %1005 = vmatpush2.bf16.xpose.msra.mxu0 0
      %1006 = vmatprep.subr.bf16.mxu0 0
      %1007 = vmatpush2.bf16.xpose.msra.mxu0 0
      %1008 = vmatprep.subr.bf16.mxu0 0
      %1009 = vmatpush2.bf16.xpose.msra.mxu0 0
      %1010 = vmatprep.subr.bf16.mxu0 0
      %1011 = vmatpush2.bf16.xpose.msra.mxu0 0
      %1012 = vmatprep.subr.bf16.mxu0 0
      %1013 = vmatpush2.bf16.xpose.msra.mxu0 0
      %1014 = vmatprep.subr.bf16.mxu0 0
      %1015 = vmatpush2.bf16.xpose.msra.mxu0 0
      %1016 = vmatprep.subr.bf16.mxu0 0
      %1017 = vmatpush2.bf16.xpose.msra.mxu0 0
      %1018 = vmatprep.subr.bf16.mxu0 0
      %1019 = vmatpush2.bf16.xpose.msra.mxu0 0
      %1020 = vmatprep.mubr.bf16.mxu0 0
      %1021 = vmatmul.mubr.bf16.gmra.mxu0 %v933
      %v1022 = vpop.f32.mrf.mxu0
      %v1023 = vadd.f32 %v984, %v1022
      %v1024 = vpop.f32.mrf.mxu0
      %v1025 = vpop.f32.mrf.mxu0
      %v1026 = vpop.f32.mrf.mxu0
      %1027 = vdwg.mxu0
      %v1028 = vmul.f32 %v1023, 0.70710677
      %v1029 = vsel %vm814, -1e+30, %v1028
      %vm1030 = vcmask 64512
      %v1031 = vsel %vm1030, %v1029, -inf
      %1032 = vmax.xlane.f32.xlu0 %v1031
      %v1033 = vpop.xlane.xlu0 %1032
      %v1034 = vsub.f32 %v1029, %v1033
      %v1035 = vmul.f32 %v1034, 1.442695
      %v1036 = vpow.pop %v1035
      %v1037 = vsel %vm1030, %v1036, 0.0
      %1038 = vadd.xlane.f32.xlu0 %v1037
      %v1039 = vpop.xlane.xlu0 %1038
      %v1040 = vrcp.pop %v1039
      %v1041 = vmul.f32 %v1036, %v1040
      %v1042 = vpack.c.bf16 %v1041, %v1041
      %v1043 = vpack.c.bf16 %v815, %v815
      %v1044 = vmul.f32 %v1041, %v779
      %v1045 = vsel %vm1030, %v1044, 0.0
      %1046 = vadd.xlane.f32.xlu0 %v1045
      %v1047 = vpop.xlane.xlu0 %1046
      %v1048 = vmul.f32 %v1041, %v788
      %v1049 = vsel %vm1030, %v1048, 0.0
      %1050 = vadd.xlane.f32.xlu0 %v1049
      %v1051 = vpop.xlane.xlu0 %1050
      %v1052 = vmul.f32 %v1041, %v797
      %v1053 = vsel %vm1030, %v1052, 0.0
      %1054 = vadd.xlane.f32.xlu0 %v1053
      %v1055 = vpop.xlane.xlu0 %1054
      %vm1056 = vcmp.eq.s32.totalorder %v813, 0
      %v1057 = vsel %vm1056, %v1047, 0.0
      %vm1058 = vcmp.eq.s32.totalorder %v813, 4
      %v1059 = vsel %vm1058, %v1051, 0.0
      %v1060 = vadd.f32 %v1057, %v1059
      %vm1061 = vcmp.eq.s32.totalorder %v813, 8
      %v1062 = vsel %vm1061, %v1055, 0.0
      %v1063 = vadd.f32 %v1060, %v1062
      %v1065 = vsel %vm1030, %v1042, 0
      %vm1067 = vcmask 1043456
      %v1069 = vsel %vm1067, %v1043, 0
      %1071 = vmatprep.subr.bf16.mxu0 0
      %1072 = vmatpush1.bf16.msra.mxu0 0
      %1073 = vmatprep.subr.bf16.mxu0 0
      %1074 = vmatpush1.bf16.msra.mxu0 0
      %1075 = vmatprep.subr.bf16.mxu0 0
      %1076 = vmatpush1.bf16.msra.mxu0 0
      %1077 = vmatprep.subr.bf16.mxu0 0
      %1078 = vmatpush1.bf16.msra.mxu0 0
      %1079 = vmatprep.subr.bf16.mxu0 0
      %1080 = vmatpush1.bf16.msra.mxu0 0
      %1081 = vmatprep.subr.bf16.mxu0 0
      %1082 = vmatpush1.bf16.msra.mxu0 0
      %1083 = vmatprep.subr.bf16.mxu0 0
      %1084 = vmatpush1.bf16.msra.mxu0 0
      %1085 = vmatprep.subr.bf16.mxu0 0
      %1086 = vmatpush1.bf16.msra.mxu0 %v1069
      %1087 = vmatprep.subr.bf16.mxu0 0
      %1088 = vmatpush2.bf16.msra.mxu0 0
      %1089 = vmatprep.subr.bf16.mxu0 0
      %1090 = vmatpush2.bf16.msra.mxu0 0
      %1091 = vmatprep.subr.bf16.mxu0 0
      %1092 = vmatpush2.bf16.msra.mxu0 0
      %1093 = vmatprep.subr.bf16.mxu0 0
      %1094 = vmatpush2.bf16.msra.mxu0 0
      %1095 = vmatprep.subr.bf16.mxu0 0
      %1096 = vmatpush2.bf16.msra.mxu0 0
      %1097 = vmatprep.subr.bf16.mxu0 0
      %1098 = vmatpush2.bf16.msra.mxu0 0
      %1099 = vmatprep.subr.bf16.mxu0 0
      %1100 = vmatpush2.bf16.msra.mxu0 0
      %1101 = vmatprep.subr.bf16.mxu0 0
      %1102 = vmatpush2.bf16.msra.mxu0 0
      %1103 = vmatprep.mubr.bf16.mxu0 0
      %1104 = vmatmul.mubr.bf16.gmra.mxu0 %v1065
      %v1105 = vpop.f32.mrf.mxu0
      %v1106 = vadd.f32 %v1063, %v1105
      %v1107 = vpop.f32.mrf.mxu0
      %v1108 = vpop.f32.mrf.mxu0
      %v1109 = vpop.f32.mrf.mxu0
      %1110 = vdwg.mxu0
      %v1111 = vpack.c.bf16 %v1106, %v1106
      %v1112 = vld [vmem:[%s6] sm:$0xf]
      %v1113 = vld [vmem:[%s6 + $0x4] sm:$0x3]
      %v1116 = vunpack.c.l.b16 %v1112
      %v1117 = vunpack.c.l.b16 %v1113
      %v1118 = vpack.c.b16 %v1117, %v1116
      %vm1119 = vcmask 97280
      %v1121 = vsel %vm1119, %v1111, 0
      %vm1123 = vcmask 1045504
      %v1125 = vsel %vm1123, %v1118, 0
      %1127 = vmatprep.subr.bf16.mxu0 0
      %1128 = vmatpush1.bf16.msra.mxu0 0
      %1129 = vmatprep.subr.bf16.mxu0 0
      %1130 = vmatpush1.bf16.msra.mxu0 0
      %1131 = vmatprep.subr.bf16.mxu0 0
      %1132 = vmatpush1.bf16.msra.mxu0 0
      %1133 = vmatprep.subr.bf16.mxu0 0
      %1134 = vmatpush1.bf16.msra.mxu0 0
      %1135 = vmatprep.subr.bf16.mxu0 0
      %1136 = vmatpush1.bf16.msra.mxu0 0
      %1137 = vmatprep.subr.bf16.mxu0 0
      %1138 = vmatpush1.bf16.msra.mxu0 0
      %1139 = vmatprep.subr.bf16.mxu0 0
      %1140 = vmatpush1.bf16.msra.mxu0 0
      %1141 = vmatprep.subr.bf16.mxu0 0
      %1142 = vmatpush1.bf16.msra.mxu0 %v1125
      %1143 = vmatprep.subr.bf16.mxu0 0
      %1144 = vmatpush2.bf16.msra.mxu0 0
      %1145 = vmatprep.subr.bf16.mxu0 0
      %1146 = vmatpush2.bf16.msra.mxu0 0
      %1147 = vmatprep.subr.bf16.mxu0 0
      %1148 = vmatpush2.bf16.msra.mxu0 0
      %1149 = vmatprep.subr.bf16.mxu0 0
      %1150 = vmatpush2.bf16.msra.mxu0 0
      %1151 = vmatprep.subr.bf16.mxu0 0
      %1152 = vmatpush2.bf16.msra.mxu0 0
      %1153 = vmatprep.subr.bf16.mxu0 0
      %1154 = vmatpush2.bf16.msra.mxu0 0
      %1155 = vmatprep.subr.bf16.mxu0 0
      %1156 = vmatpush2.bf16.msra.mxu0 0
      %1157 = vmatprep.subr.bf16.mxu0 0
      %1158 = vmatpush2.bf16.msra.mxu0 0
      %1159 = vmatprep.mubr.bf16.mxu0 0
      %1160 = vmatmul.mubr.bf16.gmra.mxu0 %v1121
      %v1161 = vpop.f32.mrf.mxu0
      %v1162 = vadd.f32 0.0, %v1161
      %v1163 = vpop.f32.mrf.mxu0
      %v1164 = vpop.f32.mrf.mxu0
      %v1165 = vpop.f32.mrf.mxu0
      %1166 = vdwg.mxu0
      %v1167 = vpack.c.bf16 %v1162, %v1162
      %v1168 = vld [vmem:[%s7] sm:$0x7]
      %v1169 = vld [vmem:[%s8] sm:$0xf]
      %v1170 = vld [vmem:[%s8 + $0x4] sm:$0x3]
      %v1173 = vunpack.c.l.b16 %v1169
      %v1174 = vunpack.c.l.b16 %v1170
      %v1175 = vpack.c.b16 %v1174, %v1173
      %v1176 = vsel %vm1119, %v1043, 0
      %v1179 = vsel %vm1123, %v1175, 0
      %1181 = vmatprep.subr.bf16.mxu0 0
      %1182 = vmatpush1.bf16.msra.mxu0 0
      %1183 = vmatprep.subr.bf16.mxu0 0
      %1184 = vmatpush1.bf16.msra.mxu0 0
      %1185 = vmatprep.subr.bf16.mxu0 0
      %1186 = vmatpush1.bf16.msra.mxu0 0
      %1187 = vmatprep.subr.bf16.mxu0 0
      %1188 = vmatpush1.bf16.msra.mxu0 0
      %1189 = vmatprep.subr.bf16.mxu0 0
      %1190 = vmatpush1.bf16.msra.mxu0 0
      %1191 = vmatprep.subr.bf16.mxu0 0
      %1192 = vmatpush1.bf16.msra.mxu0 0
      %1193 = vmatprep.subr.bf16.mxu0 0
      %1194 = vmatpush1.bf16.msra.mxu0 0
      %1195 = vmatprep.subr.bf16.mxu0 0
      %1196 = vmatpush1.bf16.msra.mxu0 %v1179
      %1197 = vmatprep.subr.bf16.mxu0 0
      %1198 = vmatpush2.bf16.msra.mxu0 0
      %1199 = vmatprep.subr.bf16.mxu0 0
      %1200 = vmatpush2.bf16.msra.mxu0 0
      %1201 = vmatprep.subr.bf16.mxu0 0
      %1202 = vmatpush2.bf16.msra.mxu0 0
      %1203 = vmatprep.subr.bf16.mxu0 0
      %1204 = vmatpush2.bf16.msra.mxu0 0
      %1205 = vmatprep.subr.bf16.mxu0 0
      %1206 = vmatpush2.bf16.msra.mxu0 0
      %1207 = vmatprep.subr.bf16.mxu0 0
      %1208 = vmatpush2.bf16.msra.mxu0 0
      %1209 = vmatprep.subr.bf16.mxu0 0
      %1210 = vmatpush2.bf16.msra.mxu0 0
      %1211 = vmatprep.subr.bf16.mxu0 0
      %1212 = vmatpush2.bf16.msra.mxu0 0
      %1213 = vmatprep.mubr.bf16.mxu0 0
      %1214 = vmatmul.mubr.bf16.gmra.mxu0 %v1176
      %v1215 = vpop.f32.mrf.mxu0
      %v1216 = vadd.f32 0.0, %v1215
      %v1217 = vpop.f32.mrf.mxu0
      %v1218 = vpop.f32.mrf.mxu0
      %v1219 = vpop.f32.mrf.mxu0
      %1220 = vdwg.mxu0
      %vm1221 = vcmask 48128
      %v1223 = vsel %vm1221, %v1167, 0
      %vm1225 = vcmask 1042432
      %v1227 = vsel %vm1225, %v1168, 0
      %1229 = vmatprep.subr.bf16.mxu0 0
      %1230 = vmatpush1.bf16.msra.mxu0 0
      %1231 = vmatprep.subr.bf16.mxu0 0
      %1232 = vmatpush1.bf16.msra.mxu0 0
      %1233 = vmatprep.subr.bf16.mxu0 0
      %1234 = vmatpush1.bf16.msra.mxu0 0
      %1235 = vmatprep.subr.bf16.mxu0 0
      %1236 = vmatpush1.bf16.msra.mxu0 0
      %1237 = vmatprep.subr.bf16.mxu0 0
      %1238 = vmatpush1.bf16.msra.mxu0 0
      %1239 = vmatprep.subr.bf16.mxu0 0
      %1240 = vmatpush1.bf16.msra.mxu0 0
      %1241 = vmatprep.subr.bf16.mxu0 0
      %1242 = vmatpush1.bf16.msra.mxu0 0
      %1243 = vmatprep.subr.bf16.mxu0 0
      %1244 = vmatpush1.bf16.msra.mxu0 %v1227
      %1245 = vmatprep.subr.bf16.mxu0 0
      %1246 = vmatpush2.bf16.msra.mxu0 0
      %1247 = vmatprep.subr.bf16.mxu0 0
      %1248 = vmatpush2.bf16.msra.mxu0 0
      %1249 = vmatprep.subr.bf16.mxu0 0
      %1250 = vmatpush2.bf16.msra.mxu0 0
      %1251 = vmatprep.subr.bf16.mxu0 0
      %1252 = vmatpush2.bf16.msra.mxu0 0
      %1253 = vmatprep.subr.bf16.mxu0 0
      %1254 = vmatpush2.bf16.msra.mxu0 0
      %1255 = vmatprep.subr.bf16.mxu0 0
      %1256 = vmatpush2.bf16.msra.mxu0 0
      %1257 = vmatprep.subr.bf16.mxu0 0
      %1258 = vmatpush2.bf16.msra.mxu0 0
      %1259 = vmatprep.subr.bf16.mxu0 0
      %1260 = vmatpush2.bf16.msra.mxu0 0
      %1261 = vmatprep.mubr.bf16.mxu0 0
      %1262 = vmatmul.mubr.bf16.gmra.mxu0 %v1223
      %v1263 = vpop.f32.mrf.mxu0
      %v1264 = vadd.f32 %v1216, %v1263
      %v1265 = vpop.f32.mrf.mxu0
      %v1266 = vpop.f32.mrf.mxu0
      %v1267 = vpop.f32.mrf.mxu0
      %1268 = vdwg.mxu0
      %v1269 = vmul.f32 %v1264, %v1264
      %1271 = vrot.lane.b32.xlu0 %v1269, 120
      %v1272 = vpop.permute.xlu0 %1271
      %v1274 = vadd.f32 %v1269, %v1272
      %1275 = vrot.lane.b32.xlu0 %v1269, 112
      %v1276 = vpop.permute.xlu0 %1275
      %v1278 = vadd.f32 %v1274, %v1276
      %v1279 = vadd.f32 %v1278, 1e-06
      %v1280 = vrsqrt.pop %v1279
      %v1281 = vmul.f32 %v1279, %v1280
      %vm1282 = vcmp.eq.f32.partialorder %v1279, inf
      %v1283 = vsel %vm1282, %v1279, %v1281
      %vm1284 = vcmp.eq.f32.partialorder %v1279, 0.0
      %v1285 = vand.u32 %v1279, 2147483648
      %v1286 = vsel %vm1284, %v1285, %v1283
      %v1287 = vld [vmem:[%s9] sm:$0x1]
      %v1289 = vlaneseq
      %v1290 = vshrl.u32 %v1289, 7
      %v1291 = vsub.s32 0, %v1290
      %v1292 = vrot.slane %v1287, %v1291
      %v1294 = vadd.f32 %v1286, %v1292
      %v1295 = vmax.f32 %v1294, 0.0
      %v1296 = vrcp.pop %v1286
      %v1297 = vmul.f32 %v1295, %v1296
      %1299 = vrot.lane.b32.xlu0 %v1297, 8
      %v1300 = vpop.permute.xlu0 %1299
      %1302 = vrot.lane.b32.xlu0 %v1297, 16
      %v1303 = vpop.permute.xlu0 %1302
      %v1305 = vsel %vm1030, %v1297, %v1300
      %vm1306 = vcmask 130048
      %v1307 = vsel %vm1306, %v1305, %v1303
      %v1308 = vmul.f32 %v1264, %v1307
      %v1309 = vmul.f32 %v1308, %v1308
      %1311 = vrot.lane.b32.xlu0 %v1309, 120
      %v1312 = vpop.permute.xlu0 %1311
      %v1314 = vadd.f32 %v1309, %v1312
      %1315 = vrot.lane.b32.xlu0 %v1309, 112
      %v1316 = vpop.permute.xlu0 %1315
      %v1318 = vadd.f32 %v1314, %v1316
      %v1319 = vadd.f32 %v1318, 1e-06
      %v1320 = vrsqrt.pop %v1319
      %v1321 = vmul.f32 %v1319, %v1320
      %vm1322 = vcmp.eq.f32.partialorder %v1319, inf
      %v1323 = vsel %vm1322, %v1319, %v1321
      %vm1324 = vcmp.eq.f32.partialorder %v1319, 0.0
      %v1325 = vand.u32 %v1319, 2147483648
      %v1326 = vsel %vm1324, %v1325, %v1323
      %v1327 = vpack.c.bf16 %v1326, %v1326
      %v1328 = vld [vmem:[%s10] sm:$0xf]
      %v1330 = vsel %vm1030, %v1327, 0
      %v1333 = vsel %vm1067, %v1328, 0
      %1335 = vmatprep.subr.bf16.mxu0 0
      %1336 = vmatpush1.bf16.msra.mxu0 0
      %1337 = vmatprep.subr.bf16.mxu0 0
      %1338 = vmatpush1.bf16.msra.mxu0 0
      %1339 = vmatprep.subr.bf16.mxu0 0
      %1340 = vmatpush1.bf16.msra.mxu0 0
      %1341 = vmatprep.subr.bf16.mxu0 0
      %1342 = vmatpush1.bf16.msra.mxu0 0
      %1343 = vmatprep.subr.bf16.mxu0 0
      %1344 = vmatpush1.bf16.msra.mxu0 0
      %1345 = vmatprep.subr.bf16.mxu0 0
      %1346 = vmatpush1.bf16.msra.mxu0 0
      %1347 = vmatprep.subr.bf16.mxu0 0
      %1348 = vmatpush1.bf16.msra.mxu0 0
      %1349 = vmatprep.subr.bf16.mxu0 0
      %1350 = vmatpush1.bf16.msra.mxu0 %v1333
      %1351 = vmatprep.subr.bf16.mxu0 0
      %1352 = vmatpush2.bf16.msra.mxu0 0
      %1353 = vmatprep.subr.bf16.mxu0 0
      %1354 = vmatpush2.bf16.msra.mxu0 0
      %1355 = vmatprep.subr.bf16.mxu0 0
      %1356 = vmatpush2.bf16.msra.mxu0 0
      %1357 = vmatprep.subr.bf16.mxu0 0
      %1358 = vmatpush2.bf16.msra.mxu0 0
      %1359 = vmatprep.subr.bf16.mxu0 0
      %1360 = vmatpush2.bf16.msra.mxu0 0
      %1361 = vmatprep.subr.bf16.mxu0 0
      %1362 = vmatpush2.bf16.msra.mxu0 0
      %1363 = vmatprep.subr.bf16.mxu0 0
      %1364 = vmatpush2.bf16.msra.mxu0 0
      %1365 = vmatprep.subr.bf16.mxu0 0
      %1366 = vmatpush2.bf16.msra.mxu0 0
      %1367 = vmatprep.mubr.bf16.mxu0 0
      %1368 = vmatmul.mubr.bf16.gmra.mxu0 %v1330
      %v1369 = vpop.f32.mrf.mxu0
      %v1370 = vadd.f32 0.0, %v1369
      %v1371 = vpop.f32.mrf.mxu0
      %v1372 = vpop.f32.mrf.mxu0
      %v1373 = vpop.f32.mrf.mxu0
      %1374 = vdwg.mxu0
      %v1375 = vld [vmem:[%s11] sm:$0xf]
      %v1377 = vsel %vm1067, %v1375, 0
      %1379 = vmatprep.subr.bf16.mxu0 0
      %1380 = vmatpush1.bf16.msra.mxu0 0
      %1381 = vmatprep.subr.bf16.mxu0 0
      %1382 = vmatpush1.bf16.msra.mxu0 0
      %1383 = vmatprep.subr.bf16.mxu0 0
      %1384 = vmatpush1.bf16.msra.mxu0 0
      %1385 = vmatprep.subr.bf16.mxu0 0
      %1386 = vmatpush1.bf16.msra.mxu0 0
      %1387 = vmatprep.subr.bf16.mxu0 0
      %1388 = vmatpush1.bf16.msra.mxu0 0
      %1389 = vmatprep.subr.bf16.mxu0 0
      %1390 = vmatpush1.bf16.msra.mxu0 0
      %1391 = vmatprep.subr.bf16.mxu0 0
      %1392 = vmatpush1.bf16.msra.mxu0 0
      %1393 = vmatprep.subr.bf16.mxu0 0
      %1394 = vmatpush1.bf16.msra.mxu0 %v1377
      %1395 = vmatprep.subr.bf16.mxu0 0
      %1396 = vmatpush2.bf16.msra.mxu0 0
      %1397 = vmatprep.subr.bf16.mxu0 0
      %1398 = vmatpush2.bf16.msra.mxu0 0
      %1399 = vmatprep.subr.bf16.mxu0 0
      %1400 = vmatpush2.bf16.msra.mxu0 0
      %1401 = vmatprep.subr.bf16.mxu0 0
      %1402 = vmatpush2.bf16.msra.mxu0 0
      %1403 = vmatprep.subr.bf16.mxu0 0
      %1404 = vmatpush2.bf16.msra.mxu0 0
      %1405 = vmatprep.subr.bf16.mxu0 0
      %1406 = vmatpush2.bf16.msra.mxu0 0
      %1407 = vmatprep.subr.bf16.mxu0 0
      %1408 = vmatpush2.bf16.msra.mxu0 0
      %1409 = vmatprep.subr.bf16.mxu0 0
      %1410 = vmatpush2.bf16.msra.mxu0 0
      %1411 = vmatprep.mubr.bf16.mxu0 0
      %1412 = vmatmul.mubr.bf16.gmra.mxu0 %v1330
      %v1413 = vpop.f32.mrf.mxu0
      %v1414 = vadd.f32 0.0, %v1413
      %v1415 = vpop.f32.mrf.mxu0
      %v1416 = vpop.f32.mrf.mxu0
      %v1417 = vpop.f32.mrf.mxu0
      %1418 = vdwg.mxu0
      %v1419 = vpack.c.bf16 %v1370, %v1370
      %v1420 = vpack.c.bf16 %v1414, %v1414
      %v1421 = vld [vmem:[%s12] sm:$0x1]
      %v1423 = vsel %vm931, %v1419, 0
      %v1426 = vsel %vm935, %v1421, 0
      %1428 = vmatprep.subr.bf16.mxu0 0
      %1429 = vmatpush1.bf16.msra.mxu0 0
      %1430 = vmatprep.subr.bf16.mxu0 0
      %1431 = vmatpush1.bf16.msra.mxu0 0
      %1432 = vmatprep.subr.bf16.mxu0 0
      %1433 = vmatpush1.bf16.msra.mxu0 0
      %1434 = vmatprep.subr.bf16.mxu0 0
      %1435 = vmatpush1.bf16.msra.mxu0 0
      %1436 = vmatprep.subr.bf16.mxu0 0
      %1437 = vmatpush1.bf16.msra.mxu0 0
      %1438 = vmatprep.subr.bf16.mxu0 0
      %1439 = vmatpush1.bf16.msra.mxu0 0
      %1440 = vmatprep.subr.bf16.mxu0 0
      %1441 = vmatpush1.bf16.msra.mxu0 0
      %1442 = vmatprep.subr.bf16.mxu0 0
      %1443 = vmatpush1.bf16.msra.mxu0 %v1426
      %1444 = vmatprep.subr.bf16.mxu0 0
      %1445 = vmatpush2.bf16.msra.mxu0 0
      %1446 = vmatprep.subr.bf16.mxu0 0
      %1447 = vmatpush2.bf16.msra.mxu0 0
      %1448 = vmatprep.subr.bf16.mxu0 0
      %1449 = vmatpush2.bf16.msra.mxu0 0
      %1450 = vmatprep.subr.bf16.mxu0 0
      %1451 = vmatpush2.bf16.msra.mxu0 0
      %1452 = vmatprep.subr.bf16.mxu0 0
      %1453 = vmatpush2.bf16.msra.mxu0 0
      %1454 = vmatprep.subr.bf16.mxu0 0
      %1455 = vmatpush2.bf16.msra.mxu0 0
      %1456 = vmatprep.subr.bf16.mxu0 0
      %1457 = vmatpush2.bf16.msra.mxu0 0
      %1458 = vmatprep.subr.bf16.mxu0 0
      %1459 = vmatpush2.bf16.msra.mxu0 0
      %1460 = vmatprep.mubr.bf16.mxu0 0
      %1461 = vmatmul.mubr.bf16.gmra.mxu0 %v1423
      %v1462 = vpop.f32.mrf.mxu0
      %v1463 = vadd.f32 0.0, %v1462
      %v1464 = vpop.f32.mrf.mxu0
      %v1465 = vpop.f32.mrf.mxu0
      %v1466 = vpop.f32.mrf.mxu0
      %1467 = vdwg.mxu0
      %1469 = vset.pattern.permute.xlu0 0
      %1470 = vperm.xlu0 %1469, %v1463
      %v1471 = vpop.permute.xlu0 %1470
      %v1473 = vmul.f32 %v809, %v1471
      %v1475 = vsel %vm931, %v1420, 0
      %1477 = vmatprep.subr.bf16.mxu0 0
      %1478 = vmatpush1.bf16.xpose.msra.mxu0 0
      %1479 = vmatprep.subr.bf16.mxu0 0
      %1480 = vmatpush1.bf16.xpose.msra.mxu0 0
      %1481 = vmatprep.subr.bf16.mxu0 0
      %1482 = vmatpush1.bf16.xpose.msra.mxu0 0
      %1483 = vmatprep.subr.bf16.mxu0 0
      %1484 = vmatpush1.bf16.xpose.msra.mxu0 0
      %1485 = vmatprep.subr.bf16.mxu0 0
      %1486 = vmatpush1.bf16.xpose.msra.mxu0 0
      %1487 = vmatprep.subr.bf16.mxu0 0
      %1488 = vmatpush1.bf16.xpose.msra.mxu0 0
      %1489 = vmatprep.subr.bf16.mxu0 0
      %1490 = vmatpush1.bf16.xpose.msra.mxu0 0
      %1491 = vmatprep.subr.bf16.mxu0 0
      %1492 = vmatpush1.bf16.xpose.msra.mxu0 %v1475
      %1493 = vmatprep.subr.bf16.mxu0 0
      %1494 = vmatpush2.bf16.xpose.msra.mxu0 0
      %1495 = vmatprep.subr.bf16.mxu0 0
      %1496 = vmatpush2.bf16.xpose.msra.mxu0 0
      %1497 = vmatprep.subr.bf16.mxu0 0
      %1498 = vmatpush2.bf16.xpose.msra.mxu0 0
      %1499 = vmatprep.subr.bf16.mxu0 0
      %1500 = vmatpush2.bf16.xpose.msra.mxu0 0
      %1501 = vmatprep.subr.bf16.mxu0 0
      %1502 = vmatpush2.bf16.xpose.msra.mxu0 0
      %1503 = vmatprep.subr.bf16.mxu0 0
      %1504 = vmatpush2.bf16.xpose.msra.mxu0 0
      %1505 = vmatprep.subr.bf16.mxu0 0
      %1506 = vmatpush2.bf16.xpose.msra.mxu0 0
      %1507 = vmatprep.subr.bf16.mxu0 0
      %1508 = vmatpush2.bf16.xpose.msra.mxu0 0
      %1509 = vmatprep.mubr.bf16.mxu0 0
      %1510 = vmatmul.mubr.bf16.gmra.mxu0 %v1423
      %v1511 = vpop.f32.mrf.mxu0
      %v1512 = vadd.f32 %v1473, %v1511
      %v1513 = vpop.f32.mrf.mxu0
      %v1514 = vpop.f32.mrf.mxu0
      %v1515 = vpop.f32.mrf.mxu0
      %1516 = vdwg.mxu0
      %v1517 = vmul.f32 %v1512, 0.70710677
      %v1518 = vsel %vm814, -1e+30, %v1517
      %v1519 = vsel %vm1030, %v1518, -inf
      %1520 = vmax.xlane.f32.xlu0 %v1519
      %v1521 = vpop.xlane.xlu0 %1520
      %v1522 = vsub.f32 %v1518, %v1521
      %v1523 = vmul.f32 %v1522, 1.442695
      %v1524 = vpow.pop %v1523
      %v1525 = vsel %vm1030, %v1524, 0.0
      %1526 = vadd.xlane.f32.xlu0 %v1525
      %v1527 = vpop.xlane.xlu0 %1526
      %v1528 = vrcp.pop %v1527
      %v1529 = vmul.f32 %v1524, %v1528
      %v1530 = vpack.c.bf16 %v1529, %v1529
      %v1531 = vpack.c.bf16 %v1308, %v1308
      %v1532 = vmul.f32 %v1529, %v779
      %v1533 = vsel %vm1030, %v1532, 0.0
      %1534 = vadd.xlane.f32.xlu0 %v1533
      %v1535 = vpop.xlane.xlu0 %1534
      %v1536 = vmul.f32 %v1529, %v788
      %v1537 = vsel %vm1030, %v1536, 0.0
      %1538 = vadd.xlane.f32.xlu0 %v1537
      %v1539 = vpop.xlane.xlu0 %1538
      %v1540 = vmul.f32 %v1529, %v797
      %v1541 = vsel %vm1030, %v1540, 0.0
      %1542 = vadd.xlane.f32.xlu0 %v1541
      %v1543 = vpop.xlane.xlu0 %1542
      %v1544 = vsel %vm1056, %v1535, 0.0
      %v1545 = vsel %vm1061, %v1539, 0.0
      %v1546 = vadd.f32 %v1544, %v1545
      %vm1547 = vcmp.eq.s32.totalorder %v813, 16
      %v1548 = vsel %vm1547, %v1543, 0.0
      %v1549 = vadd.f32 %v1546, %v1548
      %v1551 = vsel %vm1030, %v1530, 0
      %v1554 = vsel %vm1067, %v1531, 0
      %1556 = vmatprep.subr.bf16.mxu0 0
      %1557 = vmatpush1.bf16.msra.mxu0 0
      %1558 = vmatprep.subr.bf16.mxu0 0
      %1559 = vmatpush1.bf16.msra.mxu0 0
      %1560 = vmatprep.subr.bf16.mxu0 0
      %1561 = vmatpush1.bf16.msra.mxu0 0
      %1562 = vmatprep.subr.bf16.mxu0 0
      %1563 = vmatpush1.bf16.msra.mxu0 0
      %1564 = vmatprep.subr.bf16.mxu0 0
      %1565 = vmatpush1.bf16.msra.mxu0 0
      %1566 = vmatprep.subr.bf16.mxu0 0
      %1567 = vmatpush1.bf16.msra.mxu0 0
      %1568 = vmatprep.subr.bf16.mxu0 0
      %1569 = vmatpush1.bf16.msra.mxu0 0
      %1570 = vmatprep.subr.bf16.mxu0 0
      %1571 = vmatpush1.bf16.msra.mxu0 %v1554
      %1572 = vmatprep.subr.bf16.mxu0 0
      %1573 = vmatpush2.bf16.msra.mxu0 0
      %1574 = vmatprep.subr.bf16.mxu0 0
      %1575 = vmatpush2.bf16.msra.mxu0 0
      %1576 = vmatprep.subr.bf16.mxu0 0
      %1577 = vmatpush2.bf16.msra.mxu0 0
      %1578 = vmatprep.subr.bf16.mxu0 0
      %1579 = vmatpush2.bf16.msra.mxu0 0
      %1580 = vmatprep.subr.bf16.mxu0 0
      %1581 = vmatpush2.bf16.msra.mxu0 0
      %1582 = vmatprep.subr.bf16.mxu0 0
      %1583 = vmatpush2.bf16.msra.mxu0 0
      %1584 = vmatprep.subr.bf16.mxu0 0
      %1585 = vmatpush2.bf16.msra.mxu0 0
      %1586 = vmatprep.subr.bf16.mxu0 0
      %1587 = vmatpush2.bf16.msra.mxu0 0
      %1588 = vmatprep.mubr.bf16.mxu0 0
      %1589 = vmatmul.mubr.bf16.gmra.mxu0 %v1551
      %v1590 = vpop.f32.mrf.mxu0
      %v1591 = vadd.f32 %v1549, %v1590
      %v1592 = vpop.f32.mrf.mxu0
      %v1593 = vpop.f32.mrf.mxu0
      %v1594 = vpop.f32.mrf.mxu0
      %1595 = vdwg.mxu0
      %v1596 = vpack.c.bf16 %v1591, %v1591
      %v1597 = vld [vmem:[%s13] sm:$0xf]
      %v1598 = vld [vmem:[%s13 + $0x4] sm:$0xf]
      %v1599 = vld [vmem:[%s13 + $0x8] sm:$0xf]
      %v1603 = vunpack.c.l.b16 %v1597
      %v1604 = vunpack.c.l.b16 %v1598
      %v1605 = vunpack.c.l.b16 %v1599
      %v1606 = vpack.c.b16 %v1604, %v1603
      %v1607 = vpack.c.b16 %v1605, %v1605
      %vm1609 = vcmask 195584
      %v1611 = vsel %vm1609, %v1596, 0
      %v1614 = vsel %vm1067, %v1607, 0
      %1616 = vmatprep.subr.bf16.mxu0 0
      %1617 = vmatpush1.bf16.msra.mxu0 0
      %1618 = vmatprep.subr.bf16.mxu0 0
      %1619 = vmatpush1.bf16.msra.mxu0 0
      %1620 = vmatprep.subr.bf16.mxu0 0
      %1621 = vmatpush1.bf16.msra.mxu0 0
      %1622 = vmatprep.subr.bf16.mxu0 0
      %1623 = vmatpush1.bf16.msra.mxu0 0
      %1624 = vmatprep.subr.bf16.mxu0 0
      %1625 = vmatpush1.bf16.msra.mxu0 0
      %1626 = vmatprep.subr.bf16.mxu0 0
      %1627 = vmatpush1.bf16.msra.mxu0 0
      %1628 = vmatprep.subr.bf16.mxu0 0
      %1629 = vmatpush1.bf16.msra.mxu0 %v1614
      %1630 = vmatprep.subr.bf16.mxu0 0
      %1631 = vmatpush1.bf16.msra.mxu0 %v1606
      %1632 = vmatprep.subr.bf16.mxu0 0
      %1633 = vmatpush2.bf16.msra.mxu0 0
      %1634 = vmatprep.subr.bf16.mxu0 0
      %1635 = vmatpush2.bf16.msra.mxu0 0
      %1636 = vmatprep.subr.bf16.mxu0 0
      %1637 = vmatpush2.bf16.msra.mxu0 0
      %1638 = vmatprep.subr.bf16.mxu0 0
      %1639 = vmatpush2.bf16.msra.mxu0 0
      %1640 = vmatprep.subr.bf16.mxu0 0
      %1641 = vmatpush2.bf16.msra.mxu0 0
      %1642 = vmatprep.subr.bf16.mxu0 0
      %1643 = vmatpush2.bf16.msra.mxu0 0
      %1644 = vmatprep.subr.bf16.mxu0 0
      %1645 = vmatpush2.bf16.msra.mxu0 0
      %1646 = vmatprep.subr.bf16.mxu0 0
      %1647 = vmatpush2.bf16.msra.mxu0 0
      %1648 = vmatprep.mubr.bf16.mxu0 0
      %1649 = vmatmul.mubr.bf16.gmra.mxu0 %v1611
      %v1650 = vpop.f32.mrf.mxu0
      %v1651 = vadd.f32 0.0, %v1650
      %v1652 = vpop.f32.mrf.mxu0
      %v1653 = vpop.f32.mrf.mxu0
      %v1654 = vpop.f32.mrf.mxu0
      %1655 = vdwg.mxu0
      %v1656 = vpack.c.bf16 %v1651, %v1651
      %v1657 = vld [vmem:[%s14] sm:$0x7]
      %v1658 = vld [vmem:[%s15] sm:$0xf]
      %v1659 = vld [vmem:[%s15 + $0x4] sm:$0xf]
      %v1660 = vld [vmem:[%s15 + $0x8] sm:$0xf]
      %v1664 = vunpack.c.l.b16 %v1658
      %v1665 = vunpack.c.l.b16 %v1659
      %v1666 = vunpack.c.l.b16 %v1660
      %v1667 = vpack.c.b16 %v1665, %v1664
      %v1668 = vpack.c.b16 %v1666, %v1666
      %v1670 = vsel %vm1609, %v1531, 0
      %v1673 = vsel %vm1067, %v1668, 0
      %1675 = vmatprep.subr.bf16.mxu0 0
      %1676 = vmatpush1.bf16.msra.mxu0 0
      %1677 = vmatprep.subr.bf16.mxu0 0
      %1678 = vmatpush1.bf16.msra.mxu0 0
      %1679 = vmatprep.subr.bf16.mxu0 0
      %1680 = vmatpush1.bf16.msra.mxu0 0
      %1681 = vmatprep.subr.bf16.mxu0 0
      %1682 = vmatpush1.bf16.msra.mxu0 0
      %1683 = vmatprep.subr.bf16.mxu0 0
      %1684 = vmatpush1.bf16.msra.mxu0 0
      %1685 = vmatprep.subr.bf16.mxu0 0
      %1686 = vmatpush1.bf16.msra.mxu0 0
      %1687 = vmatprep.subr.bf16.mxu0 0
      %1688 = vmatpush1.bf16.msra.mxu0 %v1673
      %1689 = vmatprep.subr.bf16.mxu0 0
      %1690 = vmatpush1.bf16.msra.mxu0 %v1667
      %1691 = vmatprep.subr.bf16.mxu0 0
      %1692 = vmatpush2.bf16.msra.mxu0 0
      %1693 = vmatprep.subr.bf16.mxu0 0
      %1694 = vmatpush2.bf16.msra.mxu0 0
      %1695 = vmatprep.subr.bf16.mxu0 0
      %1696 = vmatpush2.bf16.msra.mxu0 0
      %1697 = vmatprep.subr.bf16.mxu0 0
      %1698 = vmatpush2.bf16.msra.mxu0 0
      %1699 = vmatprep.subr.bf16.mxu0 0
      %1700 = vmatpush2.bf16.msra.mxu0 0
      %1701 = vmatprep.subr.bf16.mxu0 0
      %1702 = vmatpush2.bf16.msra.mxu0 0
      %1703 = vmatprep.subr.bf16.mxu0 0
      %1704 = vmatpush2.bf16.msra.mxu0 0
      %1705 = vmatprep.subr.bf16.mxu0 0
      %1706 = vmatpush2.bf16.msra.mxu0 0
      %1707 = vmatprep.mubr.bf16.mxu0 0
      %1708 = vmatmul.mubr.bf16.gmra.mxu0 %v1670
      %v1709 = vpop.f32.mrf.mxu0
      %v1710 = vadd.f32 0.0, %v1709
      %v1711 = vpop.f32.mrf.mxu0
      %v1712 = vpop.f32.mrf.mxu0
      %v1713 = vpop.f32.mrf.mxu0
      %1714 = vdwg.mxu0
      %v1716 = vsel %vm1221, %v1656, 0
      %v1719 = vsel %vm1225, %v1657, 0
      %1721 = vmatprep.subr.bf16.mxu0 0
      %1722 = vmatpush1.bf16.msra.mxu0 0
      %1723 = vmatprep.subr.bf16.mxu0 0
      %1724 = vmatpush1.bf16.msra.mxu0 0
      %1725 = vmatprep.subr.bf16.mxu0 0
      %1726 = vmatpush1.bf16.msra.mxu0 0
      %1727 = vmatprep.subr.bf16.mxu0 0
      %1728 = vmatpush1.bf16.msra.mxu0 0
      %1729 = vmatprep.subr.bf16.mxu0 0
      %1730 = vmatpush1.bf16.msra.mxu0 0
      %1731 = vmatprep.subr.bf16.mxu0 0
      %1732 = vmatpush1.bf16.msra.mxu0 0
      %1733 = vmatprep.subr.bf16.mxu0 0
      %1734 = vmatpush1.bf16.msra.mxu0 0
      %1735 = vmatprep.subr.bf16.mxu0 0
      %1736 = vmatpush1.bf16.msra.mxu0 %v1719
      %1737 = vmatprep.subr.bf16.mxu0 0
      %1738 = vmatpush2.bf16.msra.mxu0 0
      %1739 = vmatprep.subr.bf16.mxu0 0
      %1740 = vmatpush2.bf16.msra.mxu0 0
      %1741 = vmatprep.subr.bf16.mxu0 0
      %1742 = vmatpush2.bf16.msra.mxu0 0
      %1743 = vmatprep.subr.bf16.mxu0 0
      %1744 = vmatpush2.bf16.msra.mxu0 0
      %1745 = vmatprep.subr.bf16.mxu0 0
      %1746 = vmatpush2.bf16.msra.mxu0 0
      %1747 = vmatprep.subr.bf16.mxu0 0
      %1748 = vmatpush2.bf16.msra.mxu0 0
      %1749 = vmatprep.subr.bf16.mxu0 0
      %1750 = vmatpush2.bf16.msra.mxu0 0
      %1751 = vmatprep.subr.bf16.mxu0 0
      %1752 = vmatpush2.bf16.msra.mxu0 0
      %1753 = vmatprep.mubr.bf16.mxu0 0
      %1754 = vmatmul.mubr.bf16.gmra.mxu0 %v1716
      %v1755 = vpop.f32.mrf.mxu0
      %v1756 = vadd.f32 %v1710, %v1755
      %v1757 = vpop.f32.mrf.mxu0
      %v1758 = vpop.f32.mrf.mxu0
      %v1759 = vpop.f32.mrf.mxu0
      %1760 = vdwg.mxu0
      %v1761 = vmul.f32 %v1756, %v1756
      %1763 = vrot.lane.b32.xlu0 %v1761, 120
      %v1764 = vpop.permute.xlu0 %1763
      %v1766 = vadd.f32 %v1761, %v1764
      %1767 = vrot.lane.b32.xlu0 %v1761, 112
      %v1768 = vpop.permute.xlu0 %1767
      %v1770 = vadd.f32 %v1766, %v1768
      %v1771 = vadd.f32 %v1770, 1e-06
      %v1772 = vrsqrt.pop %v1771
      %v1773 = vmul.f32 %v1771, %v1772
      %vm1774 = vcmp.eq.f32.partialorder %v1771, inf
      %v1775 = vsel %vm1774, %v1771, %v1773
      %vm1776 = vcmp.eq.f32.partialorder %v1771, 0.0
      %v1777 = vand.u32 %v1771, 2147483648
      %v1778 = vsel %vm1776, %v1777, %v1775
      %v1779 = vld [vmem:[%s16] sm:$0x1]
      %v1781 = vlaneseq
      %v1782 = vshrl.u32 %v1781, 7
      %v1783 = vsub.s32 0, %v1782
      %v1784 = vrot.slane %v1779, %v1783
      %v1786 = vadd.f32 %v1778, %v1784
      %v1787 = vmax.f32 %v1786, 0.0
      %v1788 = vrcp.pop %v1778
      %v1789 = vmul.f32 %v1787, %v1788
      %1791 = vrot.lane.b32.xlu0 %v1789, 8
      %v1792 = vpop.permute.xlu0 %1791
      %1794 = vrot.lane.b32.xlu0 %v1789, 16
      %v1795 = vpop.permute.xlu0 %1794
      %v1797 = vsel %vm1030, %v1789, %v1792
      %v1798 = vsel %vm1306, %v1797, %v1795
      %v1799 = vmul.f32 %v1756, %v1798
      %v1800 = vmul.f32 %v1799, %v1799
      %1802 = vrot.lane.b32.xlu0 %v1800, 120
      %v1803 = vpop.permute.xlu0 %1802
      %v1805 = vadd.f32 %v1800, %v1803
      %1806 = vrot.lane.b32.xlu0 %v1800, 112
      %v1807 = vpop.permute.xlu0 %1806
      %v1809 = vadd.f32 %v1805, %v1807
      %v1810 = vadd.f32 %v1809, 1e-06
      %v1811 = vrsqrt.pop %v1810
      %v1812 = vmul.f32 %v1810, %v1811
      %vm1813 = vcmp.eq.f32.partialorder %v1810, inf
      %v1814 = vsel %vm1813, %v1810, %v1812
      %vm1815 = vcmp.eq.f32.partialorder %v1810, 0.0
      %v1816 = vand.u32 %v1810, 2147483648
      %v1817 = vsel %vm1815, %v1816, %v1814
      %v1818 = vpack.c.bf16 %v1817, %v1817
      %v1819 = vld [vmem:[%s17] sm:$0xf]
      %v1821 = vsel %vm1030, %v1818, 0
      %v1824 = vsel %vm1067, %v1819, 0
      %1826 = vmatprep.subr.bf16.mxu0 0
      %1827 = vmatpush1.bf16.msra.mxu0 0
      %1828 = vmatprep.subr.bf16.mxu0 0
      %1829 = vmatpush1.bf16.msra.mxu0 0
      %1830 = vmatprep.subr.bf16.mxu0 0
      %1831 = vmatpush1.bf16.msra.mxu0 0
      %1832 = vmatprep.subr.bf16.mxu0 0
      %1833 = vmatpush1.bf16.msra.mxu0 0
      %1834 = vmatprep.subr.bf16.mxu0 0
      %1835 = vmatpush1.bf16.msra.mxu0 0
      %1836 = vmatprep.subr.bf16.mxu0 0
      %1837 = vmatpush1.bf16.msra.mxu0 0
      %1838 = vmatprep.subr.bf16.mxu0 0
      %1839 = vmatpush1.bf16.msra.mxu0 0
      %1840 = vmatprep.subr.bf16.mxu0 0
      %1841 = vmatpush1.bf16.msra.mxu0 %v1824
      %1842 = vmatprep.subr.bf16.mxu0 0
      %1843 = vmatpush2.bf16.msra.mxu0 0
      %1844 = vmatprep.subr.bf16.mxu0 0
      %1845 = vmatpush2.bf16.msra.mxu0 0
      %1846 = vmatprep.subr.bf16.mxu0 0
      %1847 = vmatpush2.bf16.msra.mxu0 0
      %1848 = vmatprep.subr.bf16.mxu0 0
      %1849 = vmatpush2.bf16.msra.mxu0 0
      %1850 = vmatprep.subr.bf16.mxu0 0
      %1851 = vmatpush2.bf16.msra.mxu0 0
      %1852 = vmatprep.subr.bf16.mxu0 0
      %1853 = vmatpush2.bf16.msra.mxu0 0
      %1854 = vmatprep.subr.bf16.mxu0 0
      %1855 = vmatpush2.bf16.msra.mxu0 0
      %1856 = vmatprep.subr.bf16.mxu0 0
      %1857 = vmatpush2.bf16.msra.mxu0 0
      %1858 = vmatprep.mubr.bf16.mxu0 0
      %1859 = vmatmul.mubr.bf16.gmra.mxu0 %v1821
      %v1860 = vpop.f32.mrf.mxu0
      %v1861 = vadd.f32 0.0, %v1860
      %v1862 = vpop.f32.mrf.mxu0
      %v1863 = vpop.f32.mrf.mxu0
      %v1864 = vpop.f32.mrf.mxu0
      %1865 = vdwg.mxu0
      %v1866 = vld [vmem:[%s18] sm:$0xf]
      %v1868 = vsel %vm1067, %v1866, 0
      %1870 = vmatprep.subr.bf16.mxu0 0
      %1871 = vmatpush1.bf16.msra.mxu0 0
      %1872 = vmatprep.subr.bf16.mxu0 0
      %1873 = vmatpush1.bf16.msra.mxu0 0
      %1874 = vmatprep.subr.bf16.mxu0 0
      %1875 = vmatpush1.bf16.msra.mxu0 0
      %1876 = vmatprep.subr.bf16.mxu0 0
      %1877 = vmatpush1.bf16.msra.mxu0 0
      %1878 = vmatprep.subr.bf16.mxu0 0
      %1879 = vmatpush1.bf16.msra.mxu0 0
      %1880 = vmatprep.subr.bf16.mxu0 0
      %1881 = vmatpush1.bf16.msra.mxu0 0
      %1882 = vmatprep.subr.bf16.mxu0 0
      %1883 = vmatpush1.bf16.msra.mxu0 0
      %1884 = vmatprep.subr.bf16.mxu0 0
      %1885 = vmatpush1.bf16.msra.mxu0 %v1868
      %1886 = vmatprep.subr.bf16.mxu0 0
      %1887 = vmatpush2.bf16.msra.mxu0 0
      %1888 = vmatprep.subr.bf16.mxu0 0
      %1889 = vmatpush2.bf16.msra.mxu0 0
      %1890 = vmatprep.subr.bf16.mxu0 0
      %1891 = vmatpush2.bf16.msra.mxu0 0
      %1892 = vmatprep.subr.bf16.mxu0 0
      %1893 = vmatpush2.bf16.msra.mxu0 0
      %1894 = vmatprep.subr.bf16.mxu0 0
      %1895 = vmatpush2.bf16.msra.mxu0 0
      %1896 = vmatprep.subr.bf16.mxu0 0
      %1897 = vmatpush2.bf16.msra.mxu0 0
      %1898 = vmatprep.subr.bf16.mxu0 0
      %1899 = vmatpush2.bf16.msra.mxu0 0
      %1900 = vmatprep.subr.bf16.mxu0 0
      %1901 = vmatpush2.bf16.msra.mxu0 0
      %1902 = vmatprep.mubr.bf16.mxu0 0
      %1903 = vmatmul.mubr.bf16.gmra.mxu0 %v1821
      %v1904 = vpop.f32.mrf.mxu0
      %v1905 = vadd.f32 0.0, %v1904
      %v1906 = vpop.f32.mrf.mxu0
      %v1907 = vpop.f32.mrf.mxu0
      %v1908 = vpop.f32.mrf.mxu0
      %1909 = vdwg.mxu0
      %v1910 = vpack.c.bf16 %v1861, %v1861
      %v1911 = vpack.c.bf16 %v1905, %v1905
      %v1912 = vld [vmem:[%s19] sm:$0x1]
      %v1914 = vsel %vm931, %v1910, 0
      %v1917 = vsel %vm935, %v1912, 0
      %1919 = vmatprep.subr.bf16.mxu0 0
      %1920 = vmatpush1.bf16.msra.mxu0 0
      %1921 = vmatprep.subr.bf16.mxu0 0
      %1922 = vmatpush1.bf16.msra.mxu0 0
      %1923 = vmatprep.subr.bf16.mxu0 0
      %1924 = vmatpush1.bf16.msra.mxu0 0
      %1925 = vmatprep.subr.bf16.mxu0 0
      %1926 = vmatpush1.bf16.msra.mxu0 0
      %1927 = vmatprep.subr.bf16.mxu0 0
      %1928 = vmatpush1.bf16.msra.mxu0 0
      %1929 = vmatprep.subr.bf16.mxu0 0
      %1930 = vmatpush1.bf16.msra.mxu0 0
      %1931 = vmatprep.subr.bf16.mxu0 0
      %1932 = vmatpush1.bf16.msra.mxu0 0
      %1933 = vmatprep.subr.bf16.mxu0 0
      %1934 = vmatpush1.bf16.msra.mxu0 %v1917
      %1935 = vmatprep.subr.bf16.mxu0 0
      %1936 = vmatpush2.bf16.msra.mxu0 0
      %1937 = vmatprep.subr.bf16.mxu0 0
      %1938 = vmatpush2.bf16.msra.mxu0 0
      %1939 = vmatprep.subr.bf16.mxu0 0
      %1940 = vmatpush2.bf16.msra.mxu0 0
      %1941 = vmatprep.subr.bf16.mxu0 0
      %1942 = vmatpush2.bf16.msra.mxu0 0
      %1943 = vmatprep.subr.bf16.mxu0 0
      %1944 = vmatpush2.bf16.msra.mxu0 0
      %1945 = vmatprep.subr.bf16.mxu0 0
      %1946 = vmatpush2.bf16.msra.mxu0 0
      %1947 = vmatprep.subr.bf16.mxu0 0
      %1948 = vmatpush2.bf16.msra.mxu0 0
      %1949 = vmatprep.subr.bf16.mxu0 0
      %1950 = vmatpush2.bf16.msra.mxu0 0
      %1951 = vmatprep.mubr.bf16.mxu0 0
      %1952 = vmatmul.mubr.bf16.gmra.mxu0 %v1914
      %v1953 = vpop.f32.mrf.mxu0
      %v1954 = vadd.f32 0.0, %v1953
      %v1955 = vpop.f32.mrf.mxu0
      %v1956 = vpop.f32.mrf.mxu0
      %v1957 = vpop.f32.mrf.mxu0
      %1958 = vdwg.mxu0
      %1960 = vset.pattern.permute.xlu0 0
      %1961 = vperm.xlu0 %1960, %v1954
      %v1962 = vpop.permute.xlu0 %1961
      %v1964 = vmul.f32 %v809, %v1962
      %v1966 = vsel %vm931, %v1911, 0
      %1968 = vmatprep.subr.bf16.mxu0 0
      %1969 = vmatpush1.bf16.xpose.msra.mxu0 0
      %1970 = vmatprep.subr.bf16.mxu0 0
      %1971 = vmatpush1.bf16.xpose.msra.mxu0 0
      %1972 = vmatprep.subr.bf16.mxu0 0
      %1973 = vmatpush1.bf16.xpose.msra.mxu0 0
      %1974 = vmatprep.subr.bf16.mxu0 0
      %1975 = vmatpush1.bf16.xpose.msra.mxu0 0
      %1976 = vmatprep.subr.bf16.mxu0 0
      %1977 = vmatpush1.bf16.xpose.msra.mxu0 0
      %1978 = vmatprep.subr.bf16.mxu0 0
      %1979 = vmatpush1.bf16.xpose.msra.mxu0 0
      %1980 = vmatprep.subr.bf16.mxu0 0
      %1981 = vmatpush1.bf16.xpose.msra.mxu0 0
      %1982 = vmatprep.subr.bf16.mxu0 0
      %1983 = vmatpush1.bf16.xpose.msra.mxu0 %v1966
      %1984 = vmatprep.subr.bf16.mxu0 0
      %1985 = vmatpush2.bf16.xpose.msra.mxu0 0
      %1986 = vmatprep.subr.bf16.mxu0 0
      %1987 = vmatpush2.bf16.xpose.msra.mxu0 0
      %1988 = vmatprep.subr.bf16.mxu0 0
      %1989 = vmatpush2.bf16.xpose.msra.mxu0 0
      %1990 = vmatprep.subr.bf16.mxu0 0
      %1991 = vmatpush2.bf16.xpose.msra.mxu0 0
      %1992 = vmatprep.subr.bf16.mxu0 0
      %1993 = vmatpush2.bf16.xpose.msra.mxu0 0
      %1994 = vmatprep.subr.bf16.mxu0 0
      %1995 = vmatpush2.bf16.xpose.msra.mxu0 0
      %1996 = vmatprep.subr.bf16.mxu0 0
      %1997 = vmatpush2.bf16.xpose.msra.mxu0 0
      %1998 = vmatprep.subr.bf16.mxu0 0
      %1999 = vmatpush2.bf16.xpose.msra.mxu0 0
      %2000 = vmatprep.mubr.bf16.mxu0 0
      %2001 = vmatmul.mubr.bf16.gmra.mxu0 %v1914
      %v2002 = vpop.f32.mrf.mxu0
      %v2003 = vadd.f32 %v1964, %v2002
      %v2004 = vpop.f32.mrf.mxu0
      %v2005 = vpop.f32.mrf.mxu0
      %v2006 = vpop.f32.mrf.mxu0
      %2007 = vdwg.mxu0
      %v2008 = vmul.f32 %v2003, 0.70710677
      %v2009 = vsel %vm814, -1e+30, %v2008
      %v2010 = vsel %vm1030, %v2009, -inf
      %2011 = vmax.xlane.f32.xlu0 %v2010
      %v2012 = vpop.xlane.xlu0 %2011
      %v2013 = vsub.f32 %v2009, %v2012
      %v2014 = vmul.f32 %v2013, 1.442695
      %v2015 = vpow.pop %v2014
      %v2016 = vsel %vm1030, %v2015, 0.0
      %2017 = vadd.xlane.f32.xlu0 %v2016
      %v2018 = vpop.xlane.xlu0 %2017
      %v2019 = vrcp.pop %v2018
      %v2020 = vmul.f32 %v2015, %v2019
      %v2021 = vpack.c.bf16 %v2020, %v2020
      %v2022 = vpack.c.bf16 %v1799, %v1799
      %v2023 = vmul.f32 %v2020, %v779
      %v2024 = vsel %vm1030, %v2023, 0.0
      %2025 = vadd.xlane.f32.xlu0 %v2024
      %v2026 = vpop.xlane.xlu0 %2025
      %v2027 = vmul.f32 %v2020, %v788
      %v2028 = vsel %vm1030, %v2027, 0.0
      %2029 = vadd.xlane.f32.xlu0 %v2028
      %v2030 = vpop.xlane.xlu0 %2029
      %v2031 = vmul.f32 %v2020, %v797
      %v2032 = vsel %vm1030, %v2031, 0.0
      %2033 = vadd.xlane.f32.xlu0 %v2032
      %v2034 = vpop.xlane.xlu0 %2033
      %v2035 = vsel %vm1056, %v2026, 0.0
      %v2036 = vsel %vm1061, %v2030, 0.0
      %v2037 = vadd.f32 %v2035, %v2036
      %v2038 = vsel %vm1547, %v2034, 0.0
      %v2039 = vadd.f32 %v2037, %v2038
      %v2041 = vsel %vm1030, %v2021, 0
      %v2044 = vsel %vm1067, %v2022, 0
      %2046 = vmatprep.subr.bf16.mxu0 0
      %2047 = vmatpush1.bf16.msra.mxu0 0
      %2048 = vmatprep.subr.bf16.mxu0 0
      %2049 = vmatpush1.bf16.msra.mxu0 0
      %2050 = vmatprep.subr.bf16.mxu0 0
      %2051 = vmatpush1.bf16.msra.mxu0 0
      %2052 = vmatprep.subr.bf16.mxu0 0
      %2053 = vmatpush1.bf16.msra.mxu0 0
      %2054 = vmatprep.subr.bf16.mxu0 0
      %2055 = vmatpush1.bf16.msra.mxu0 0
      %2056 = vmatprep.subr.bf16.mxu0 0
      %2057 = vmatpush1.bf16.msra.mxu0 0
      %2058 = vmatprep.subr.bf16.mxu0 0
      %2059 = vmatpush1.bf16.msra.mxu0 0
      %2060 = vmatprep.subr.bf16.mxu0 0
      %2061 = vmatpush1.bf16.msra.mxu0 %v2044
      %2062 = vmatprep.subr.bf16.mxu0 0
      %2063 = vmatpush2.bf16.msra.mxu0 0
      %2064 = vmatprep.subr.bf16.mxu0 0
      %2065 = vmatpush2.bf16.msra.mxu0 0
      %2066 = vmatprep.subr.bf16.mxu0 0
      %2067 = vmatpush2.bf16.msra.mxu0 0
      %2068 = vmatprep.subr.bf16.mxu0 0
      %2069 = vmatpush2.bf16.msra.mxu0 0
      %2070 = vmatprep.subr.bf16.mxu0 0
      %2071 = vmatpush2.bf16.msra.mxu0 0
      %2072 = vmatprep.subr.bf16.mxu0 0
      %2073 = vmatpush2.bf16.msra.mxu0 0
      %2074 = vmatprep.subr.bf16.mxu0 0
      %2075 = vmatpush2.bf16.msra.mxu0 0
      %2076 = vmatprep.subr.bf16.mxu0 0
      %2077 = vmatpush2.bf16.msra.mxu0 0
      %2078 = vmatprep.mubr.bf16.mxu0 0
      %2079 = vmatmul.mubr.bf16.gmra.mxu0 %v2041
      %v2080 = vpop.f32.mrf.mxu0
      %v2081 = vadd.f32 %v2039, %v2080
      %v2082 = vpop.f32.mrf.mxu0
      %v2083 = vpop.f32.mrf.mxu0
      %v2084 = vpop.f32.mrf.mxu0
      %2085 = vdwg.mxu0
      %v2086 = vpack.c.bf16 %v2081, %v2081
      %v2087 = vld [vmem:[%s20] sm:$0xf]
      %v2088 = vld [vmem:[%s20 + $0x4] sm:$0xf]
      %v2089 = vld [vmem:[%s20 + $0x8] sm:$0xf]
      %v2093 = vunpack.c.l.b16 %v2087
      %v2094 = vunpack.c.l.b16 %v2088
      %v2095 = vunpack.c.l.b16 %v2089
      %v2096 = vpack.c.b16 %v2094, %v2093
      %v2097 = vpack.c.b16 %v2095, %v2095
      %v2100 = vsel %vm1609, %v2086, 0
      %v2103 = vsel %vm1067, %v2097, 0
      %2105 = vmatprep.subr.bf16.mxu0 0
      %2106 = vmatpush1.bf16.msra.mxu0 0
      %2107 = vmatprep.subr.bf16.mxu0 0
      %2108 = vmatpush1.bf16.msra.mxu0 0
      %2109 = vmatprep.subr.bf16.mxu0 0
      %2110 = vmatpush1.bf16.msra.mxu0 0
      %2111 = vmatprep.subr.bf16.mxu0 0
      %2112 = vmatpush1.bf16.msra.mxu0 0
      %2113 = vmatprep.subr.bf16.mxu0 0
      %2114 = vmatpush1.bf16.msra.mxu0 0
      %2115 = vmatprep.subr.bf16.mxu0 0
      %2116 = vmatpush1.bf16.msra.mxu0 0
      %2117 = vmatprep.subr.bf16.mxu0 0
      %2118 = vmatpush1.bf16.msra.mxu0 %v2103
      %2119 = vmatprep.subr.bf16.mxu0 0
      %2120 = vmatpush1.bf16.msra.mxu0 %v2096
      %2121 = vmatprep.subr.bf16.mxu0 0
      %2122 = vmatpush2.bf16.msra.mxu0 0
      %2123 = vmatprep.subr.bf16.mxu0 0
      %2124 = vmatpush2.bf16.msra.mxu0 0
      %2125 = vmatprep.subr.bf16.mxu0 0
      %2126 = vmatpush2.bf16.msra.mxu0 0
      %2127 = vmatprep.subr.bf16.mxu0 0
      %2128 = vmatpush2.bf16.msra.mxu0 0
      %2129 = vmatprep.subr.bf16.mxu0 0
      %2130 = vmatpush2.bf16.msra.mxu0 0
      %2131 = vmatprep.subr.bf16.mxu0 0
      %2132 = vmatpush2.bf16.msra.mxu0 0
      %2133 = vmatprep.subr.bf16.mxu0 0
      %2134 = vmatpush2.bf16.msra.mxu0 0
      %2135 = vmatprep.subr.bf16.mxu0 0
      %2136 = vmatpush2.bf16.msra.mxu0 0
      %2137 = vmatprep.mubr.bf16.mxu0 0
      %2138 = vmatmul.mubr.bf16.gmra.mxu0 %v2100
      %v2139 = vpop.f32.mrf.mxu0
      %v2140 = vadd.f32 0.0, %v2139
      %v2141 = vpop.f32.mrf.mxu0
      %v2142 = vpop.f32.mrf.mxu0
      %v2143 = vpop.f32.mrf.mxu0
      %2144 = vdwg.mxu0
      %v2145 = vpack.c.bf16 %v2140, %v2140
      %v2146 = vld [vmem:[%s21] sm:$0x7]
      %v2147 = vld [vmem:[%s22] sm:$0xf]
      %v2148 = vld [vmem:[%s22 + $0x4] sm:$0xf]
      %v2149 = vld [vmem:[%s22 + $0x8] sm:$0xf]
      %v2153 = vunpack.c.l.b16 %v2147
      %v2154 = vunpack.c.l.b16 %v2148
      %v2155 = vunpack.c.l.b16 %v2149
      %v2156 = vpack.c.b16 %v2154, %v2153
      %v2157 = vpack.c.b16 %v2155, %v2155
      %v2159 = vsel %vm1609, %v2022, 0
      %v2162 = vsel %vm1067, %v2157, 0
      %2164 = vmatprep.subr.bf16.mxu0 0
      %2165 = vmatpush1.bf16.msra.mxu0 0
      %2166 = vmatprep.subr.bf16.mxu0 0
      %2167 = vmatpush1.bf16.msra.mxu0 0
      %2168 = vmatprep.subr.bf16.mxu0 0
      %2169 = vmatpush1.bf16.msra.mxu0 0
      %2170 = vmatprep.subr.bf16.mxu0 0
      %2171 = vmatpush1.bf16.msra.mxu0 0
      %2172 = vmatprep.subr.bf16.mxu0 0
      %2173 = vmatpush1.bf16.msra.mxu0 0
      %2174 = vmatprep.subr.bf16.mxu0 0
      %2175 = vmatpush1.bf16.msra.mxu0 0
      %2176 = vmatprep.subr.bf16.mxu0 0
      %2177 = vmatpush1.bf16.msra.mxu0 %v2162
      %2178 = vmatprep.subr.bf16.mxu0 0
      %2179 = vmatpush1.bf16.msra.mxu0 %v2156
      %2180 = vmatprep.subr.bf16.mxu0 0
      %2181 = vmatpush2.bf16.msra.mxu0 0
      %2182 = vmatprep.subr.bf16.mxu0 0
      %2183 = vmatpush2.bf16.msra.mxu0 0
      %2184 = vmatprep.subr.bf16.mxu0 0
      %2185 = vmatpush2.bf16.msra.mxu0 0
      %2186 = vmatprep.subr.bf16.mxu0 0
      %2187 = vmatpush2.bf16.msra.mxu0 0
      %2188 = vmatprep.subr.bf16.mxu0 0
      %2189 = vmatpush2.bf16.msra.mxu0 0
      %2190 = vmatprep.subr.bf16.mxu0 0
      %2191 = vmatpush2.bf16.msra.mxu0 0
      %2192 = vmatprep.subr.bf16.mxu0 0
      %2193 = vmatpush2.bf16.msra.mxu0 0
      %2194 = vmatprep.subr.bf16.mxu0 0
      %2195 = vmatpush2.bf16.msra.mxu0 0
      %2196 = vmatprep.mubr.bf16.mxu0 0
      %2197 = vmatmul.mubr.bf16.gmra.mxu0 %v2159
      %v2198 = vpop.f32.mrf.mxu0
      %v2199 = vadd.f32 0.0, %v2198
      %v2200 = vpop.f32.mrf.mxu0
      %v2201 = vpop.f32.mrf.mxu0
      %v2202 = vpop.f32.mrf.mxu0
      %2203 = vdwg.mxu0
      %v2205 = vsel %vm1221, %v2145, 0
      %v2208 = vsel %vm1225, %v2146, 0
      %2210 = vmatprep.subr.bf16.mxu0 0
      %2211 = vmatpush1.bf16.msra.mxu0 0
      %2212 = vmatprep.subr.bf16.mxu0 0
      %2213 = vmatpush1.bf16.msra.mxu0 0
      %2214 = vmatprep.subr.bf16.mxu0 0
      %2215 = vmatpush1.bf16.msra.mxu0 0
      %2216 = vmatprep.subr.bf16.mxu0 0
      %2217 = vmatpush1.bf16.msra.mxu0 0
      %2218 = vmatprep.subr.bf16.mxu0 0
      %2219 = vmatpush1.bf16.msra.mxu0 0
      %2220 = vmatprep.subr.bf16.mxu0 0
      %2221 = vmatpush1.bf16.msra.mxu0 0
      %2222 = vmatprep.subr.bf16.mxu0 0
      %2223 = vmatpush1.bf16.msra.mxu0 0
      %2224 = vmatprep.subr.bf16.mxu0 0
      %2225 = vmatpush1.bf16.msra.mxu0 %v2208
      %2226 = vmatprep.subr.bf16.mxu0 0
      %2227 = vmatpush2.bf16.msra.mxu0 0
      %2228 = vmatprep.subr.bf16.mxu0 0
      %2229 = vmatpush2.bf16.msra.mxu0 0
      %2230 = vmatprep.subr.bf16.mxu0 0
      %2231 = vmatpush2.bf16.msra.mxu0 0
      %2232 = vmatprep.subr.bf16.mxu0 0
      %2233 = vmatpush2.bf16.msra.mxu0 0
      %2234 = vmatprep.subr.bf16.mxu0 0
      %2235 = vmatpush2.bf16.msra.mxu0 0
      %2236 = vmatprep.subr.bf16.mxu0 0
      %2237 = vmatpush2.bf16.msra.mxu0 0
      %2238 = vmatprep.subr.bf16.mxu0 0
      %2239 = vmatpush2.bf16.msra.mxu0 0
      %2240 = vmatprep.subr.bf16.mxu0 0
      %2241 = vmatpush2.bf16.msra.mxu0 0
      %2242 = vmatprep.mubr.bf16.mxu0 0
      %2243 = vmatmul.mubr.bf16.gmra.mxu0 %v2205
      %v2244 = vpop.f32.mrf.mxu0
      %v2245 = vadd.f32 %v2199, %v2244
      %v2246 = vpop.f32.mrf.mxu0
      %v2247 = vpop.f32.mrf.mxu0
      %v2248 = vpop.f32.mrf.mxu0
      %2249 = vdwg.mxu0
      %2250 = vst.msk [vmem:[%s766] sm:$0xff] %vm1221, %v2245
      %p2251 = scmp.lt.s32.totalorder %s35, 1
      %s2252 = scalar_select %p2251, %s35, 1
      %s2253 = smul.addr %s2252, 8
      %s2254 = scalar_lea.vmem %s24, %s2253
      // Predicated region
      $region117: #{tpu_custom_call.1} parent=115 // pred_check
        %p2255 = pneg %p572
      $region118: #{tpu_custom_call.1} parent=115 // pred_check_branch
        %2257 = sbr.rel (%p2255) target = $region120
      $region119: #{tpu_custom_call.1} parent=115 // pred_region
        _
      $region120: #{tpu_custom_call.1} parent=115 // pred_fallthru
        _
    $region116: #{tpu_custom_call.1} parent=5 // pred_fallthru
      _
    %p2258 = scmp.le.s32.totalorder 2, %s30
    // Predicated region
    $region121: #{tpu_custom_call.1} parent=5 // pred_check
      %p2259 = pneg %p2258
    $region122: #{tpu_custom_call.1} parent=5 // pred_check_branch
      %2261 = sbr.rel (%p2259) target = $region124
    $region123: #{tpu_custom_call.1} parent=5 // pred_region
      %s2262 = ssub.s32 %s30, 2
      // Predicated region
      $region125: #{tpu_custom_call.1} parent=123 // pred_check
        %p2263 = pneg %p578
      $region126: #{tpu_custom_call.1} parent=123 // pred_check_branch
        %2265 = sbr.rel (%p2263) target = $region128
      $region127: #{tpu_custom_call.1} parent=123 // pred_region
        %p2266 = scmp.lt.s32.totalorder %s36, 1
        %s2267 = scalar_select %p2266, %s36, 1
        %s2268 = smul.addr %s2267, 8
        %s2269 = scalar_lea.vmem %s24, %s2268
      $region128: #{tpu_custom_call.1} parent=123 // pred_fallthru
        _
    $region124: #{tpu_custom_call.1} parent=5 // pred_fallthru
      _
  $region6: #{tpu_custom_call.1} parent=0 // loop_footer
    %s34 = sadd.s32 1, %s30
  $region7: #{tpu_custom_call.1} parent=0 // loop_footer_branch
    %29 = sbr.rel target = $region3
  $region8: #{tpu_custom_call.1} parent=0 // loop_exit
    _

</llo_original>
